<compile_context>
chip_gen: v5e
topology: v5e:2x2
jax: 0.10.0
libtpu: 0.0.40
codegen_flags: <defaults>
</compile_context>

<pallas_src>
import functools
import math

import jax
import jax.numpy as jnp
from jax.experimental import pallas as pl
from jax.experimental.pallas import tpu as pltpu


# ----------------------------------------------------------------------------
# Fused kernel: MHA(x, x, x) -> (out_proj . conv . norm folded) -> + x
# ----------------------------------------------------------------------------
def _interpolate_kernel(x_ref, wqkv_ref, bqkv_ref, woc_ref, boc_ref, o_ref, *,
                        num_heads):
    """x_ref    : (Bblk, T, C)  activation slab for this grid step
       wqkv_ref : (C, 3C)       packed Q|K|V weights (Q cols pre-scaled 1/sqrt(D))
       bqkv_ref : (1, 3C)       packed Q|K|V bias (Q part pre-scaled)
       woc_ref  : (C, C)        fused out_proj . conv . norm-scale weights
       boc_ref  : (1, C)        fused bias (+ norm shift)
       o_ref    : (Bblk, T, C)  output slab
    """
    Bblk, T, C = x_ref.shape
    D = C // num_heads
    m_dt = wqkv_ref.dtype  # MXU operand dtype (f32 or bf16), chosen by wrapper

    # Flatten batch rows into the matmul M dimension (last dim unchanged).
    x = x_ref[...].reshape(Bblk * T, C)                      # f32, VMEM resident
    x_mm = x.astype(m_dt)

    # Packed QKV projection: one lane-dense (Bblk*T, C) @ (C, 3C) MXU matmul.
    qkv = jnp.dot(x_mm, wqkv_ref[...],
                  preferred_element_type=jnp.float32) + bqkv_ref[...]
    qkv3 = qkv.reshape(Bblk, T, 3 * C)

    # Residual + fused bias seed the accumulator -> single epilogue store pass.
    out_acc = x + boc_ref[...]

    # Per-head attention, accumulating straight into the fused out-projection.
    for h in range(num_heads):
        qh = qkv3[:, :, h * D:(h + 1) * D].astype(m_dt)              # (Bblk,T,D)
        kh = qkv3[:, :, C + h * D:C + (h + 1) * D].astype(m_dt)      # (Bblk,T,D)
        vh = qkv3[:, :, 2 * C + h * D:2 * C + (h + 1) * D].astype(m_dt)

        # q @ k^T per batch element (1/sqrt(D) already folded into Q).
        s = jnp.einsum("bqd,bkd->bqk", qh, kh,
                       preferred_element_type=jnp.float32)           # (Bblk,T,T)
        m = jnp.max(s, axis=-1, keepdims=True)
        p = jnp.exp(s - m)                                           # unnormalized
        l = jnp.sum(p, axis=-1, keepdims=True)                       # (Bblk,T,1)

        ho = jnp.einsum("bqk,bkd->bqd", p.astype(m_dt), vh,
                        preferred_element_type=jnp.float32)          # (Bblk,T,D)
        # Deferred softmax normalization: (T, D) multiply on the EUP/VPU
        # instead of a (T, T) divide.
        ho = ho * pl.reciprocal(l, approx=True)

        out_acc = out_acc + jnp.dot(
            ho.reshape(Bblk * T, D).astype(m_dt),
            woc_ref[h * D:(h + 1) * D, :],
            preferred_element_type=jnp.float32)                      # (Bblk*T,C)

    o_ref[...] = out_acc.reshape(Bblk, T, C).astype(o_ref.dtype)


def _pick_block_b(B, T, max_rows=512):
    """Largest divisor of B with block_b * T <= max_rows (MXU M fill)."""
    best = 1
    for cand in range(1, B + 1):
        if B % cand == 0 and cand * T <= max_rows:
            best = cand
    return best


def interpolate_forward(params, x, *, num_heads=4, eps=1e-5,
                        mxu_dtype=jnp.float32, block_b=None):
    """x: (B, T, C) float32 -> (B, T, C).

    mxu_dtype: dtype for matmul operands (weights pre-cast here, activations
    cast in-kernel).  Use jnp.bfloat16 on v5e/v6e/v7x for full MXU throughput;
    softmax / biases / residual / accumulation stay f32 either way.
    """
    B, T, C = x.shape
    assert C % num_heads == 0
    D = C // num_heads

    # ---- parameter folding (done once, outside the kernel, in f32) ----------
    hi = jax.lax.Precision.HIGHEST
    bn = params["bn"]
    scale = bn["gamma"] / jnp.sqrt(bn["var"] + eps)
    shift = bn["beta"] - bn["mean"] * scale
    wc_s = params["w_conv"] * scale[None, :]                       # (C, C)
    w_oc = jnp.dot(params["w_out"], wc_s, precision=hi)            # (C, C)
    b_oc = (jnp.dot(params["b_out"], wc_s, precision=hi)
            + params["b_conv"] * scale + shift)                    # (C,)

    # Fold 1/sqrt(D) into the Q columns of the packed QKV projection.
    inv_sqrt_d = 1.0 / math.sqrt(D)
    q_scale = jnp.concatenate([jnp.full((C,), inv_sqrt_d, jnp.float32),
                               jnp.ones((2 * C,), jnp.float32)])
    w_qkv = params["w_qkv"] * q_scale[None, :]                     # (C, 3C)
    b_qkv = params["b_qkv"] * q_scale                              # (3C,)

    # Cast only the MXU weight operands; biases stay f32.
    w_qkv_m = w_qkv.astype(mxu_dtype)
    w_oc_m = w_oc.astype(mxu_dtype)

    if block_b is None:
        block_b = _pick_block_b(B, T)
    assert B % block_b == 0

    # Advisory cost estimate so XLA schedules/overlaps the custom call.
    flops = 2 * B * T * C * (4 * C + 2 * T)
    transcendentals = B * num_heads * T * T
    bytes_accessed = (2 * B * T * C * 4
                      + w_qkv_m.size * w_qkv_m.dtype.itemsize
                      + w_oc_m.size * w_oc_m.dtype.itemsize
                      + 4 * (3 * C + C))

    kernel = functools.partial(_interpolate_kernel, num_heads=num_heads)
    return pl.pallas_call(
        kernel,
        out_shape=jax.ShapeDtypeStruct((B, T, C), x.dtype),
        grid=(B // block_b,),
        in_specs=[
            pl.BlockSpec((block_b, T, C), lambda i: (i, 0, 0)),   # activations
            pl.BlockSpec((C, 3 * C), lambda i: (0, 0)),           # W_qkv (resident)
            pl.BlockSpec((1, 3 * C), lambda i: (0, 0)),           # b_qkv (resident)
            pl.BlockSpec((C, C), lambda i: (0, 0)),               # W_oc  (resident)
            pl.BlockSpec((1, C), lambda i: (0, 0)),               # b_oc  (resident)
        ],
        out_specs=pl.BlockSpec((block_b, T, C), lambda i: (i, 0, 0)),
        compiler_params=pltpu.CompilerParams(
            dimension_semantics=("parallel",)),
        cost_estimate=pl.CostEstimate(flops=flops,
                                      transcendentals=transcendentals,
                                      bytes_accessed=bytes_accessed),
    )(x, w_qkv_m, b_qkv.reshape(1, 3 * C), w_oc_m, b_oc.reshape(1, C))


# ----------------------------------------------------------------------------
# Deterministic parameter init
# ----------------------------------------------------------------------------
def init_interpolate_params(key, C):
    ks = jax.random.split(key, 10)
    s = 1.0 / math.sqrt(C)
    return {
        # MultiheadAttention: packed in-projection (x @ W_qkv + b_qkv) and
        # out-projection (a @ W_out + b_out).
        "w_qkv": s * jax.random.normal(ks[0], (C, 3 * C), jnp.float32),
        "b_qkv": 0.01 * jax.random.normal(ks[1], (3 * C,), jnp.float32),
        "w_out": s * jax.random.normal(ks[2], (C, C), jnp.float32),
        "b_out": 0.01 * jax.random.normal(ks[3], (C,), jnp.float32),
        # Pointwise Conv1d(C, C, kernel_size=1): y = x @ W_conv + b_conv.
        "w_conv": s * jax.random.normal(ks[4], (C, C), jnp.float32),
        "b_conv": 0.01 * jax.random.normal(ks[5], (C,), jnp.float32),
        # FreqNorm (BatchNorm1d over channels), inference-mode running stats.
        "bn": {
            "gamma": 1.0 + 0.1 * jax.random.normal(ks[6], (C,), jnp.float32),
            "beta": 0.1 * jax.random.normal(ks[7], (C,), jnp.float32),
            "mean": 0.1 * jax.random.normal(ks[8], (C,), jnp.float32),
            "var": 1.0 + 0.1 * jax.random.uniform(ks[9], (C,), jnp.float32),
        },
    }


# ----------------------------------------------------------------------------
# Pure-JAX reference (unfused, same math) for a tight sanity check
# ----------------------------------------------------------------------------
def interpolate_ref(params, x, *, num_heads=4, eps=1e-5):
    B, T, C = x.shape
    D = C // num_heads
    hi = jax.lax.Precision.HIGHEST

    qkv = jnp.einsum("btc,cd->btd", x, params["w_qkv"],
                     precision=hi) + params["b_qkv"]
    q = qkv[..., :C].reshape(B, T, num_heads, D)
    k = qkv[..., C:2 * C].reshape(B, T, num_heads, D)
    v = qkv[..., 2 * C:].reshape(B, T, num_heads, D)

    s = jnp.einsum("bqhd,bkhd->bhqk", q, k, precision=hi) / math.sqrt(D)
    p = jax.nn.softmax(s, axis=-1)
    attn = jnp.einsum("bhqk,bkhd->bqhd", p, v, precision=hi).reshape(B, T, C)

    a = jnp.einsum("btc,cd->btd", attn, params["w_out"],
                   precision=hi) + params["b_out"]
    y = jnp.einsum("btc,cd->btd", a, params["w_conv"],
                   precision=hi) + params["b_conv"]
    bn = params["bn"]
    scale = bn["gamma"] / jnp.sqrt(bn["var"] + eps)
    shift = bn["beta"] - bn["mean"] * scale
    return y * scale + shift + x


# ----------------------------------------------------------------------------
if __name__ == "__main__":
    class HP:  # small, deterministic hyper-params consistent with the module
        channels = 128        # divisible by num_heads=4; lane-dense (=128)

    B, T = 2, 64
    key = jax.random.PRNGKey(0)
    kp, kx = jax.random.split(key)
    params = init_interpolate_params(kp, HP.channels)
    x = jax.random.normal(kx, (B, T, HP.channels), jnp.float32)  # (B, T, C)

    ref = interpolate_ref(params, x, num_heads=4)

    # f32 MXU-operand path: tight check (approx reciprocal adds ~1e-3 max).
    out = interpolate_forward(params, x, num_heads=4)
    out = jax.block_until_ready(out)
    assert out.shape == (B, T, HP.channels), out.shape
    err = float(jnp.max(jnp.abs(out - ref)))
    assert err < 5e-3, f"f32 mismatch vs JAX reference: max abs err = {err}"

    # bf16 MXU-operand path (recommended on v5e/v6e/v7x): coarse sanity check,
    # dominated by bf16 operand rounding versus the f32 HIGHEST reference.
    out_bf16 = interpolate_forward(params, x, num_heads=4,
                                   mxu_dtype=jnp.bfloat16)
    out_bf16 = jax.block_until_ready(out_bf16)
    assert bool(jnp.all(jnp.isfinite(out_bf16)))
    err_bf16 = float(jnp.max(jnp.abs(out_bf16 - ref)))
    assert err_bf16 < 3e-1, f"bf16 mismatch too large: max abs err = {err_bf16}"

    print("KERNEL_OK")
</pallas_src>

<mosaic_0001>
module attributes {stable_mosaic.version = 11 : i64} {
  func.func @_interpolate_kernel(%arg0: i32, %arg1: memref<2x64x128xf32, #tpu.memory_space<vmem>>, %arg2: memref<128x384xf32, #tpu.memory_space<vmem>>, %arg3: memref<1x384xf32, #tpu.memory_space<vmem>>, %arg4: memref<128x128xf32, #tpu.memory_space<vmem>>, %arg5: memref<1x128xf32, #tpu.memory_space<vmem>>, %arg6: memref<2x64x128xf32, #tpu.memory_space<vmem>>) attributes {dimension_semantics = [#tpu.dimension_semantics<parallel>], iteration_bounds = array<i64: 1>, scalar_prefetch = 0 : i64, scratch_operands = 0 : i64, tpu.core_type = #tpu.core_type<tc>, window_params = [{transform_indices = @transform_0, window_bounds = array<i64: 2, 64, 128>}, {pipeline_mode = #tpu.pipeline_mode<synchronous>, transform_indices = @transform_1, window_bounds = array<i64: 128, 384>}, {pipeline_mode = #tpu.pipeline_mode<synchronous>, transform_indices = @transform_2, window_bounds = array<i64: 1, 384>}, {pipeline_mode = #tpu.pipeline_mode<synchronous>, transform_indices = @transform_3, window_bounds = array<i64: 128, 128>}, {pipeline_mode = #tpu.pipeline_mode<synchronous>, transform_indices = @transform_4, window_bounds = array<i64: 1, 128>}, {transform_indices = @transform_5, window_bounds = array<i64: 2, 64, 128>}]} {
    %c0 = arith.constant 0 : index
    %c0_0 = arith.constant 0 : index
    %c0_1 = arith.constant 0 : index
    %0 = vector.load %arg1[%c0, %c0_0, %c0_1] : memref<2x64x128xf32, #tpu.memory_space<vmem>>, vector<2x64x128xf32>
    %1 = vector.shape_cast %0 : vector<2x64x128xf32> to vector<128x128xf32>
    %c0_2 = arith.constant 0 : index
    %c0_3 = arith.constant 0 : index
    %2 = vector.load %arg2[%c0_2, %c0_3] : memref<128x384xf32, #tpu.memory_space<vmem>>, vector<128x384xf32>
    %cst = arith.constant dense<0.000000e+00> : vector<128x384xf32>
    %3 = tpu.matmul %1, %2, %cst {dimension_numbers = #tpu.dot_dimension_numbers<[1], [0], [0], [1], [0, 0, 1, 1], [], []>} : vector<128x128xf32>, vector<128x384xf32>, vector<128x384xf32> -> vector<128x384xf32>
    %c0_4 = arith.constant 0 : index
    %c0_5 = arith.constant 0 : index
    %4 = vector.load %arg3[%c0_4, %c0_5] : memref<1x384xf32, #tpu.memory_space<vmem>>, vector<1x384xf32>
    %5 = vector.broadcast %4 : vector<1x384xf32> to vector<128x384xf32>
    %6 = arith.addf %3, %5 : vector<128x384xf32>
    %7 = vector.shape_cast %6 : vector<128x384xf32> to vector<2x64x384xf32>
    %c0_6 = arith.constant 0 : index
    %c0_7 = arith.constant 0 : index
    %8 = vector.load %arg5[%c0_6, %c0_7] : memref<1x128xf32, #tpu.memory_space<vmem>>, vector<1x128xf32>
    %9 = vector.broadcast %8 : vector<1x128xf32> to vector<128x128xf32>
    %10 = arith.addf %1, %9 : vector<128x128xf32>
    %11 = vector.extract_strided_slice %7 {offsets = [0, 0, 0], sizes = [2, 64, 32], strides = [1, 1, 1]} : vector<2x64x384xf32> to vector<2x64x32xf32>
    %12 = vector.extract_strided_slice %7 {offsets = [0, 0, 128], sizes = [2, 64, 32], strides = [1, 1, 1]} : vector<2x64x384xf32> to vector<2x64x32xf32>
    %13 = vector.extract_strided_slice %7 {offsets = [0, 0, 256], sizes = [2, 64, 32], strides = [1, 1, 1]} : vector<2x64x384xf32> to vector<2x64x32xf32>
    "tpu.trace_start"() <{level = 10 : i32, message = "bqd,bkd->bqk"}> : () -> ()
    %cst_8 = arith.constant dense<0.000000e+00> : vector<2x64x64xf32>
    %14 = tpu.matmul %11, %12, %cst_8 {dimension_numbers = #tpu.dot_dimension_numbers<[2], [2], [1], [1], [0, 0, 0, 1, 1, 1], [0], [0]>} : vector<2x64x32xf32>, vector<2x64x32xf32>, vector<2x64x64xf32> -> vector<2x64x64xf32>
    "tpu.trace_stop"() : () -> ()
    %cst_9 = arith.constant dense<0xFF800000> : vector<2x64xf32>
    %15 = vector.multi_reduction <maximumf>, %14, %cst_9 [2] : vector<2x64x64xf32> to vector<2x64xf32>
    %16 = vector.shape_cast %15 : vector<2x64xf32> to vector<2x64x1xf32>
    %17 = vector.broadcast %16 : vector<2x64x1xf32> to vector<2x64x64xf32>
    %18 = arith.subf %14, %17 : vector<2x64x64xf32>
    %19 = math.exp %18 : vector<2x64x64xf32>
    %cst_10 = arith.constant dense<0.000000e+00> : vector<2x64xf32>
    %20 = vector.multi_reduction <add>, %19, %cst_10 [2] : vector<2x64x64xf32> to vector<2x64xf32>
    %21 = vector.shape_cast %20 : vector<2x64xf32> to vector<2x64x1xf32>
    "tpu.trace_start"() <{level = 10 : i32, message = "bqk,bkd->bqd"}> : () -> ()
    %cst_11 = arith.constant dense<0.000000e+00> : vector<2x64x32xf32>
    %22 = tpu.matmul %19, %13, %cst_11 {dimension_numbers = #tpu.dot_dimension_numbers<[2], [1], [1], [2], [0, 0, 0, 1, 1, 2], [0], [0]>} : vector<2x64x64xf32>, vector<2x64x32xf32>, vector<2x64x32xf32> -> vector<2x64x32xf32>
    "tpu.trace_stop"() : () -> ()
    %23 = tpu.reciprocal %21 {approx = true} : vector<2x64x1xf32> -> vector<2x64x1xf32>
    %24 = vector.broadcast %23 : vector<2x64x1xf32> to vector<2x64x32xf32>
    %25 = arith.mulf %22, %24 : vector<2x64x32xf32>
    %26 = vector.shape_cast %25 : vector<2x64x32xf32> to vector<128x32xf32>
    %c0_12 = arith.constant 0 : index
    %c0_13 = arith.constant 0 : index
    %27 = vector.load %arg4[%c0_12, %c0_13] : memref<128x128xf32, #tpu.memory_space<vmem>>, vector<32x128xf32>
    %cst_14 = arith.constant dense<0.000000e+00> : vector<128x128xf32>
    %28 = tpu.matmul %26, %27, %cst_14 {dimension_numbers = #tpu.dot_dimension_numbers<[1], [0], [0], [1], [0, 0, 1, 1], [], []>} : vector<128x32xf32>, vector<32x128xf32>, vector<128x128xf32> -> vector<128x128xf32>
    %29 = arith.addf %10, %28 : vector<128x128xf32>
    %30 = vector.extract_strided_slice %7 {offsets = [0, 0, 32], sizes = [2, 64, 32], strides = [1, 1, 1]} : vector<2x64x384xf32> to vector<2x64x32xf32>
    %31 = vector.extract_strided_slice %7 {offsets = [0, 0, 160], sizes = [2, 64, 32], strides = [1, 1, 1]} : vector<2x64x384xf32> to vector<2x64x32xf32>
    %32 = vector.extract_strided_slice %7 {offsets = [0, 0, 288], sizes = [2, 64, 32], strides = [1, 1, 1]} : vector<2x64x384xf32> to vector<2x64x32xf32>
    "tpu.trace_start"() <{level = 10 : i32, message = "bqd,bkd->bqk"}> : () -> ()
    %cst_15 = arith.constant dense<0.000000e+00> : vector<2x64x64xf32>
    %33 = tpu.matmul %30, %31, %cst_15 {dimension_numbers = #tpu.dot_dimension_numbers<[2], [2], [1], [1], [0, 0, 0, 1, 1, 1], [0], [0]>} : vector<2x64x32xf32>, vector<2x64x32xf32>, vector<2x64x64xf32> -> vector<2x64x64xf32>
    "tpu.trace_stop"() : () -> ()
    %cst_16 = arith.constant dense<0xFF800000> : vector<2x64xf32>
    %34 = vector.multi_reduction <maximumf>, %33, %cst_16 [2] : vector<2x64x64xf32> to vector<2x64xf32>
    %35 = vector.shape_cast %34 : vector<2x64xf32> to vector<2x64x1xf32>
    %36 = vector.broadcast %35 : vector<2x64x1xf32> to vector<2x64x64xf32>
    %37 = arith.subf %33, %36 : vector<2x64x64xf32>
    %38 = math.exp %37 : vector<2x64x64xf32>
    %cst_17 = arith.constant dense<0.000000e+00> : vector<2x64xf32>
    %39 = vector.multi_reduction <add>, %38, %cst_17 [2] : vector<2x64x64xf32> to vector<2x64xf32>
    %40 = vector.shape_cast %39 : vector<2x64xf32> to vector<2x64x1xf32>
    "tpu.trace_start"() <{level = 10 : i32, message = "bqk,bkd->bqd"}> : () -> ()
    %cst_18 = arith.constant dense<0.000000e+00> : vector<2x64x32xf32>
    %41 = tpu.matmul %38, %32, %cst_18 {dimension_numbers = #tpu.dot_dimension_numbers<[2], [1], [1], [2], [0, 0, 0, 1, 1, 2], [0], [0]>} : vector<2x64x64xf32>, vector<2x64x32xf32>, vector<2x64x32xf32> -> vector<2x64x32xf32>
    "tpu.trace_stop"() : () -> ()
    %42 = tpu.reciprocal %40 {approx = true} : vector<2x64x1xf32> -> vector<2x64x1xf32>
    %43 = vector.broadcast %42 : vector<2x64x1xf32> to vector<2x64x32xf32>
    %44 = arith.mulf %41, %43 : vector<2x64x32xf32>
    %45 = vector.shape_cast %44 : vector<2x64x32xf32> to vector<128x32xf32>
    %c32 = arith.constant 32 : index
    %c0_19 = arith.constant 0 : index
    %46 = vector.load %arg4[%c32, %c0_19] : memref<128x128xf32, #tpu.memory_space<vmem>>, vector<32x128xf32>
    %cst_20 = arith.constant dense<0.000000e+00> : vector<128x128xf32>
    %47 = tpu.matmul %45, %46, %cst_20 {dimension_numbers = #tpu.dot_dimension_numbers<[1], [0], [0], [1], [0, 0, 1, 1], [], []>} : vector<128x32xf32>, vector<32x128xf32>, vector<128x128xf32> -> vector<128x128xf32>
    %48 = arith.addf %29, %47 : vector<128x128xf32>
    %49 = vector.extract_strided_slice %7 {offsets = [0, 0, 64], sizes = [2, 64, 32], strides = [1, 1, 1]} : vector<2x64x384xf32> to vector<2x64x32xf32>
    %50 = vector.extract_strided_slice %7 {offsets = [0, 0, 192], sizes = [2, 64, 32], strides = [1, 1, 1]} : vector<2x64x384xf32> to vector<2x64x32xf32>
    %51 = vector.extract_strided_slice %7 {offsets = [0, 0, 320], sizes = [2, 64, 32], strides = [1, 1, 1]} : vector<2x64x384xf32> to vector<2x64x32xf32>
    "tpu.trace_start"() <{level = 10 : i32, message = "bqd,bkd->bqk"}> : () -> ()
    %cst_21 = arith.constant dense<0.000000e+00> : vector<2x64x64xf32>
    %52 = tpu.matmul %49, %50, %cst_21 {dimension_numbers = #tpu.dot_dimension_numbers<[2], [2], [1], [1], [0, 0, 0, 1, 1, 1], [0], [0]>} : vector<2x64x32xf32>, vector<2x64x32xf32>, vector<2x64x64xf32> -> vector<2x64x64xf32>
    "tpu.trace_stop"() : () -> ()
    %cst_22 = arith.constant dense<0xFF800000> : vector<2x64xf32>
    %53 = vector.multi_reduction <maximumf>, %52, %cst_22 [2] : vector<2x64x64xf32> to vector<2x64xf32>
    %54 = vector.shape_cast %53 : vector<2x64xf32> to vector<2x64x1xf32>
    %55 = vector.broadcast %54 : vector<2x64x1xf32> to vector<2x64x64xf32>
    %56 = arith.subf %52, %55 : vector<2x64x64xf32>
    %57 = math.exp %56 : vector<2x64x64xf32>
    %cst_23 = arith.constant dense<0.000000e+00> : vector<2x64xf32>
    %58 = vector.multi_reduction <add>, %57, %cst_23 [2] : vector<2x64x64xf32> to vector<2x64xf32>
    %59 = vector.shape_cast %58 : vector<2x64xf32> to vector<2x64x1xf32>
    "tpu.trace_start"() <{level = 10 : i32, message = "bqk,bkd->bqd"}> : () -> ()
    %cst_24 = arith.constant dense<0.000000e+00> : vector<2x64x32xf32>
    %60 = tpu.matmul %57, %51, %cst_24 {dimension_numbers = #tpu.dot_dimension_numbers<[2], [1], [1], [2], [0, 0, 0, 1, 1, 2], [0], [0]>} : vector<2x64x64xf32>, vector<2x64x32xf32>, vector<2x64x32xf32> -> vector<2x64x32xf32>
    "tpu.trace_stop"() : () -> ()
    %61 = tpu.reciprocal %59 {approx = true} : vector<2x64x1xf32> -> vector<2x64x1xf32>
    %62 = vector.broadcast %61 : vector<2x64x1xf32> to vector<2x64x32xf32>
    %63 = arith.mulf %60, %62 : vector<2x64x32xf32>
    %64 = vector.shape_cast %63 : vector<2x64x32xf32> to vector<128x32xf32>
    %c64 = arith.constant 64 : index
    %c0_25 = arith.constant 0 : index
    %65 = vector.load %arg4[%c64, %c0_25] : memref<128x128xf32, #tpu.memory_space<vmem>>, vector<32x128xf32>
    %cst_26 = arith.constant dense<0.000000e+00> : vector<128x128xf32>
    %66 = tpu.matmul %64, %65, %cst_26 {dimension_numbers = #tpu.dot_dimension_numbers<[1], [0], [0], [1], [0, 0, 1, 1], [], []>} : vector<128x32xf32>, vector<32x128xf32>, vector<128x128xf32> -> vector<128x128xf32>
    %67 = arith.addf %48, %66 : vector<128x128xf32>
    %68 = vector.extract_strided_slice %7 {offsets = [0, 0, 96], sizes = [2, 64, 32], strides = [1, 1, 1]} : vector<2x64x384xf32> to vector<2x64x32xf32>
    %69 = vector.extract_strided_slice %7 {offsets = [0, 0, 224], sizes = [2, 64, 32], strides = [1, 1, 1]} : vector<2x64x384xf32> to vector<2x64x32xf32>
    %70 = vector.extract_strided_slice %7 {offsets = [0, 0, 352], sizes = [2, 64, 32], strides = [1, 1, 1]} : vector<2x64x384xf32> to vector<2x64x32xf32>
    "tpu.trace_start"() <{level = 10 : i32, message = "bqd,bkd->bqk"}> : () -> ()
    %cst_27 = arith.constant dense<0.000000e+00> : vector<2x64x64xf32>
    %71 = tpu.matmul %68, %69, %cst_27 {dimension_numbers = #tpu.dot_dimension_numbers<[2], [2], [1], [1], [0, 0, 0, 1, 1, 1], [0], [0]>} : vector<2x64x32xf32>, vector<2x64x32xf32>, vector<2x64x64xf32> -> vector<2x64x64xf32>
    "tpu.trace_stop"() : () -> ()
    %cst_28 = arith.constant dense<0xFF800000> : vector<2x64xf32>
    %72 = vector.multi_reduction <maximumf>, %71, %cst_28 [2] : vector<2x64x64xf32> to vector<2x64xf32>
    %73 = vector.shape_cast %72 : vector<2x64xf32> to vector<2x64x1xf32>
    %74 = vector.broadcast %73 : vector<2x64x1xf32> to vector<2x64x64xf32>
    %75 = arith.subf %71, %74 : vector<2x64x64xf32>
    %76 = math.exp %75 : vector<2x64x64xf32>
    %cst_29 = arith.constant dense<0.000000e+00> : vector<2x64xf32>
    %77 = vector.multi_reduction <add>, %76, %cst_29 [2] : vector<2x64x64xf32> to vector<2x64xf32>
    %78 = vector.shape_cast %77 : vector<2x64xf32> to vector<2x64x1xf32>
    "tpu.trace_start"() <{level = 10 : i32, message = "bqk,bkd->bqd"}> : () -> ()
    %cst_30 = arith.constant dense<0.000000e+00> : vector<2x64x32xf32>
    %79 = tpu.matmul %76, %70, %cst_30 {dimension_numbers = #tpu.dot_dimension_numbers<[2], [1], [1], [2], [0, 0, 0, 1, 1, 2], [0], [0]>} : vector<2x64x64xf32>, vector<2x64x32xf32>, vector<2x64x32xf32> -> vector<2x64x32xf32>
    "tpu.trace_stop"() : () -> ()
    %80 = tpu.reciprocal %78 {approx = true} : vector<2x64x1xf32> -> vector<2x64x1xf32>
    %81 = vector.broadcast %80 : vector<2x64x1xf32> to vector<2x64x32xf32>
    %82 = arith.mulf %79, %81 : vector<2x64x32xf32>
    %83 = vector.shape_cast %82 : vector<2x64x32xf32> to vector<128x32xf32>
    %c96 = arith.constant 96 : index
    %c0_31 = arith.constant 0 : index
    %84 = vector.load %arg4[%c96, %c0_31] : memref<128x128xf32, #tpu.memory_space<vmem>>, vector<32x128xf32>
    %cst_32 = arith.constant dense<0.000000e+00> : vector<128x128xf32>
    %85 = tpu.matmul %83, %84, %cst_32 {dimension_numbers = #tpu.dot_dimension_numbers<[1], [0], [0], [1], [0, 0, 1, 1], [], []>} : vector<128x32xf32>, vector<32x128xf32>, vector<128x128xf32> -> vector<128x128xf32>
    %86 = arith.addf %67, %85 : vector<128x128xf32>
    %87 = vector.shape_cast %86 : vector<128x128xf32> to vector<2x64x128xf32>
    %c0_33 = arith.constant 0 : index
    %c0_34 = arith.constant 0 : index
    %c0_35 = arith.constant 0 : index
    %88 = vector.load %arg6[%c0_33, %c0_34, %c0_35] : memref<2x64x128xf32, #tpu.memory_space<vmem>>, vector<2x64x128xf32>
    tpu.vector_store %arg6[%c0_33, %c0_34, %c0_35], %87 {strides = array<i32>} : memref<2x64x128xf32, #tpu.memory_space<vmem>>, vector<2x64x128xf32>,
    return
  }
  func.func @transform_0(%arg0: i32) -> (i32, i32, i32) {
    %c0_i32 = arith.constant 0 : i32
    %c0_i32_0 = arith.constant 0 : i32
    %c0_i32_1 = arith.constant 0 : i32
    return %arg0, %c0_i32, %c0_i32_0 : i32, i32, i32
  }
  func.func @transform_1(%arg0: i32) -> (i32, i32) {
    %c0_i32 = arith.constant 0 : i32
    %c0_i32_0 = arith.constant 0 : i32
    %c0_i32_1 = arith.constant 0 : i32
    return %c0_i32, %c0_i32_0 : i32, i32
  }
  func.func @transform_2(%arg0: i32) -> (i32, i32) {
    %c0_i32 = arith.constant 0 : i32
    %c0_i32_0 = arith.constant 0 : i32
    %c0_i32_1 = arith.constant 0 : i32
    return %c0_i32, %c0_i32_0 : i32, i32
  }
  func.func @transform_3(%arg0: i32) -> (i32, i32) {
    %c0_i32 = arith.constant 0 : i32
    %c0_i32_0 = arith.constant 0 : i32
    %c0_i32_1 = arith.constant 0 : i32
    return %c0_i32, %c0_i32_0 : i32, i32
  }
  func.func @transform_4(%arg0: i32) -> (i32, i32) {
    %c0_i32 = arith.constant 0 : i32
    %c0_i32_0 = arith.constant 0 : i32
    %c0_i32_1 = arith.constant 0 : i32
    return %c0_i32, %c0_i32_0 : i32, i32
  }
  func.func @transform_5(%arg0: i32) -> (i32, i32, i32) {
    %c0_i32 = arith.constant 0 : i32
    %c0_i32_0 = arith.constant 0 : i32
    %c0_i32_1 = arith.constant 0 : i32
    return %arg0, %c0_i32, %c0_i32_0 : i32, i32, i32
  }
}

</mosaic_0001>

<llo_original>
// kernel: tpu_custom_call.1
$region0: #{tpu_custom_call.1}
  #allocation0 [shape = 'u32[]', space=smem, size = 0x4, offset = 0x4, fixed_abs, tag = 'smem constant byte address 0x4 - core index']
  #allocation1 [shape = 'u32[72,128]{1,0:T(1,128)}', space=vmem, size = 0x9000, scoped, tag = 'internal scratch']
  %s0 = inlined_call_operand.hbm [shape: f32[2,64,128], index: 0, kind: input, shape index: {}]
  %s1 = inlined_call_operand.hbm [shape: f32[128,384], index: 1, kind: input, shape index: {}]
  %s2 = inlined_call_operand.hbm [shape: f32[1,384], index: 2, kind: input, shape index: {}]
  %s3 = inlined_call_operand.hbm [shape: f32[128,128], index: 3, kind: input, shape index: {}]
  %s4 = inlined_call_operand.vmem [shape: f32[1,128], index: 4, kind: input, shape index: {}]
  %s5 = inlined_call_operand.hbm [shape: f32[2,64,128], index: 5, kind: output, shape index: {}]
  %s6 = sld [smem:[#allocation0]]
  $region46: #{tpu_custom_call.1} parent=0
    _
  %s8 = ssub.s32 1, %s6
  %s9 = scalar_select 0, %s8, %s6
  $region1: #{tpu_custom_call.1} parent=0
    #allocation2 [shape = 'u8[65536]{0}', space=vmem, size = 0x10000, scoped, tag = 'input window, operand 0, single buffered']
    #allocation3 [shape = 's32[1]{0}', space=sflag, size = 0x4, scoped, tag = 'scoped memory for tpu_custom_call.1']
    #allocation4 [shape = 's32[1]{0}', space=sflag, size = 0x4, scoped, tag = 'scoped memory for tpu_custom_call.1']
    #allocation5 [shape = 'u8[196608]{0}', space=vmem, size = 0x30000, scoped, tag = 'input window, operand 1, single buffered']
    #allocation6 [shape = 's32[1]{0}', space=sflag, size = 0x4, scoped, tag = 'scoped memory for tpu_custom_call.1']
    #allocation7 [shape = 'u8[1536]{0}', space=vmem, size = 0x800, scoped, tag = 'input window, operand 2, single buffered']
    #allocation8 [shape = 'u8[65536]{0}', space=vmem, size = 0x10000, scoped, tag = 'input window, operand 3, single buffered']
    #allocation9 [shape = 's32[1]{0}', space=sflag, size = 0x4, scoped, tag = 'scoped memory for tpu_custom_call.1']
    #allocation10 [shape = 'u8[65536]{0}', space=vmem, size = 0x10000, scoped, tag = 'output window, operand 0, single buffered']
    %10 = vsyncpa [#allocation3], 0
    %11 = vsyncpa [#allocation6], 0
    %12 = vsyncpa [#allocation9], 0
    %13 = vsyncpa [#allocation4], 0
    // Predicated region
    $region2: #{tpu_custom_call.1} parent=1 // pred_check
      _
    $region3: #{tpu_custom_call.1} parent=1 // pred_check_branch
      %15 = sbr.rel (0) target = $region5
    $region4: #{tpu_custom_call.1} parent=1 // pred_region
      %17 = vsyncadd [#allocation3], 0
      %s18 = sshll.u32 %s0, 4
      %s19 = int_to_ptr.hbm [resolvable:$true] %s18
      %s20 = sshll.u32 [#allocation2], 4
      %s21 = int_to_ptr.vmem [resolvable:$true] %s20
      %26 = dma.hbm_to_vmem [thread:$0]  %s19, 2048, %s21, [#allocation3], 128, 128, 8
    $region5: #{tpu_custom_call.1} parent=1 // pred_fallthru
      _
    // Predicated region
    $region6: #{tpu_custom_call.1} parent=1 // pred_check
      _
    $region7: #{tpu_custom_call.1} parent=1 // pred_check_branch
      %28 = sbr.rel (0) target = $region9
    $region8: #{tpu_custom_call.1} parent=1 // pred_region
      %30 = vsyncadd [#allocation6], 0
      %s31 = sshll.u32 %s1, 4
      %s32 = int_to_ptr.hbm [resolvable:$true] %s31
      %s33 = sshll.u32 [#allocation5], 4
      %s34 = int_to_ptr.vmem [resolvable:$true] %s33
      %39 = dma.hbm_to_vmem [thread:$0]  %s32, 6144, %s34, [#allocation6], 384, 384, 24
    $region9: #{tpu_custom_call.1} parent=1 // pred_fallthru
      _
    // Predicated region
    $region10: #{tpu_custom_call.1} parent=1 // pred_check
      _
    $region11: #{tpu_custom_call.1} parent=1 // pred_check_branch
      %41 = sbr.rel (0) target = $region13
    $region12: #{tpu_custom_call.1} parent=1 // pred_region
      %43 = vsyncadd [#allocation6], 0
      %s45 = sshll.u32 %s2, 4
      %s46 = int_to_ptr.hbm [resolvable:$true] %s45
      %s47 = sshll.u32 [#allocation7], 4
      %s48 = int_to_ptr.vmem [resolvable:$true] %s47
      %50 = dma.hbm_to_vmem [thread:$0]  %s46, 48, %s48, [#allocation6]
    $region13: #{tpu_custom_call.1} parent=1 // pred_fallthru
      _
    // Predicated region
    $region14: #{tpu_custom_call.1} parent=1 // pred_check
      _
    $region15: #{tpu_custom_call.1} parent=1 // pred_check_branch
      %52 = sbr.rel (0) target = $region17
    $region16: #{tpu_custom_call.1} parent=1 // pred_region
      %54 = vsyncadd [#allocation9], 0
      %s55 = sshll.u32 %s3, 4
      %s56 = int_to_ptr.hbm [resolvable:$true] %s55
      %s57 = sshll.u32 [#allocation8], 4
      %s58 = int_to_ptr.vmem [resolvable:$true] %s57
      %63 = dma.hbm_to_vmem [thread:$0]  %s56, 2048, %s58, [#allocation9], 128, 128, 8
    $region17: #{tpu_custom_call.1} parent=1 // pred_fallthru
      _
    // Predicated region
    $region18: #{tpu_custom_call.1} parent=1 // pred_check
      _
    $region19: #{tpu_custom_call.1} parent=1 // pred_check_branch
      %65 = sbr.rel (0) target = $region21
    $region20: #{tpu_custom_call.1} parent=1 // pred_region
      _
    $region21: #{tpu_custom_call.1} parent=1 // pred_fallthru
      _
    // Predicated region
    $region22: #{tpu_custom_call.1} parent=1 // pred_check
      _
    $region23: #{tpu_custom_call.1} parent=1 // pred_check_branch
      %67 = sbr.rel (0) target = $region25
    $region24: #{tpu_custom_call.1} parent=1 // pred_region
      %69 = dma.done [#allocation3], 2048
    $region25: #{tpu_custom_call.1} parent=1 // pred_fallthru
      _
    // Predicated region
    $region26: #{tpu_custom_call.1} parent=1 // pred_check
      _
    $region27: #{tpu_custom_call.1} parent=1 // pred_check_branch
      %71 = sbr.rel (0) target = $region29
    $region28: #{tpu_custom_call.1} parent=1 // pred_region
      %73 = dma.done [#allocation6], 6144
    $region29: #{tpu_custom_call.1} parent=1 // pred_fallthru
      _
    // Predicated region
    $region30: #{tpu_custom_call.1} parent=1 // pred_check
      _
    $region31: #{tpu_custom_call.1} parent=1 // pred_check_branch
      %75 = sbr.rel (0) target = $region33
    $region32: #{tpu_custom_call.1} parent=1 // pred_region
      %77 = dma.done [#allocation6], 48
    $region33: #{tpu_custom_call.1} parent=1 // pred_fallthru
      _
    // Predicated region
    $region34: #{tpu_custom_call.1} parent=1 // pred_check
      _
    $region35: #{tpu_custom_call.1} parent=1 // pred_check_branch
      %79 = sbr.rel (0) target = $region37
    $region36: #{tpu_custom_call.1} parent=1 // pred_region
      %81 = dma.done [#allocation9], 2048
    $region37: #{tpu_custom_call.1} parent=1 // pred_fallthru
      _
    %v82 = vld [vmem:[#allocation2] sm:$0xff]
    %v83 = vld [vmem:[#allocation2 + $0x8] sm:$0xff]
    %v84 = vld [vmem:[#allocation2 + $0x10] sm:$0xff]
    %v85 = vld [vmem:[#allocation2 + $0x18] sm:$0xff]
    %v86 = vld [vmem:[#allocation2 + $0x20] sm:$0xff]
    %v87 = vld [vmem:[#allocation2 + $0x28] sm:$0xff]
    %v88 = vld [vmem:[#allocation2 + $0x30] sm:$0xff]
    %v89 = vld [vmem:[#allocation2 + $0x38] sm:$0xff]
    %v90 = vld [vmem:[#allocation2 + $0x40] sm:$0xff]
    %v91 = vld [vmem:[#allocation2 + $0x48] sm:$0xff]
    %v92 = vld [vmem:[#allocation2 + $0x50] sm:$0xff]
    %v93 = vld [vmem:[#allocation2 + $0x58] sm:$0xff]
    %v94 = vld [vmem:[#allocation2 + $0x60] sm:$0xff]
    %v95 = vld [vmem:[#allocation2 + $0x68] sm:$0xff]
    %v96 = vld [vmem:[#allocation2 + $0x70] sm:$0xff]
    %v97 = vld [vmem:[#allocation2 + $0x78] sm:$0xff]
    %v98 = vld [vmem:[#allocation5] sm:$0xff]
    %v99 = vld [vmem:[#allocation5 + $0x8] sm:$0xff]
    %v100 = vld [vmem:[#allocation5 + $0x10] sm:$0xff]
    %v101 = vld [vmem:[#allocation5 + $0x18] sm:$0xff]
    %v102 = vld [vmem:[#allocation5 + $0x20] sm:$0xff]
    %v103 = vld [vmem:[#allocation5 + $0x28] sm:$0xff]
    %v104 = vld [vmem:[#allocation5 + $0x30] sm:$0xff]
    %v105 = vld [vmem:[#allocation5 + $0x38] sm:$0xff]
    %v106 = vld [vmem:[#allocation5 + $0x40] sm:$0xff]
    %v107 = vld [vmem:[#allocation5 + $0x48] sm:$0xff]
    %v108 = vld [vmem:[#allocation5 + $0x50] sm:$0xff]
    %v109 = vld [vmem:[#allocation5 + $0x58] sm:$0xff]
    %v110 = vld [vmem:[#allocation5 + $0x60] sm:$0xff]
    %v111 = vld [vmem:[#allocation5 + $0x68] sm:$0xff]
    %v112 = vld [vmem:[#allocation5 + $0x70] sm:$0xff]
    %v113 = vld [vmem:[#allocation5 + $0x78] sm:$0xff]
    %v114 = vld [vmem:[#allocation5 + $0x80] sm:$0xff]
    %v115 = vld [vmem:[#allocation5 + $0x88] sm:$0xff]
    %v116 = vld [vmem:[#allocation5 + $0x90] sm:$0xff]
    %v117 = vld [vmem:[#allocation5 + $0x98] sm:$0xff]
    %v118 = vld [vmem:[#allocation5 + $0xa0] sm:$0xff]
    %v119 = vld [vmem:[#allocation5 + $0xa8] sm:$0xff]
    %v120 = vld [vmem:[#allocation5 + $0xb0] sm:$0xff]
    %v121 = vld [vmem:[#allocation5 + $0xb8] sm:$0xff]
    %v122 = vld [vmem:[#allocation5 + $0xc0] sm:$0xff]
    %v123 = vld [vmem:[#allocation5 + $0xc8] sm:$0xff]
    %v124 = vld [vmem:[#allocation5 + $0xd0] sm:$0xff]
    %v125 = vld [vmem:[#allocation5 + $0xd8] sm:$0xff]
    %v126 = vld [vmem:[#allocation5 + $0xe0] sm:$0xff]
    %v127 = vld [vmem:[#allocation5 + $0xe8] sm:$0xff]
    %v128 = vld [vmem:[#allocation5 + $0xf0] sm:$0xff]
    %v129 = vld [vmem:[#allocation5 + $0xf8] sm:$0xff]
    %v130 = vld [vmem:[#allocation5 + $0x100] sm:$0xff]
    %v131 = vld [vmem:[#allocation5 + $0x108] sm:$0xff]
    %v132 = vld [vmem:[#allocation5 + $0x110] sm:$0xff]
    %v133 = vld [vmem:[#allocation5 + $0x118] sm:$0xff]
    %v134 = vld [vmem:[#allocation5 + $0x120] sm:$0xff]
    %v135 = vld [vmem:[#allocation5 + $0x128] sm:$0xff]
    %v136 = vld [vmem:[#allocation5 + $0x130] sm:$0xff]
    %v137 = vld [vmem:[#allocation5 + $0x138] sm:$0xff]
    %v138 = vld [vmem:[#allocation5 + $0x140] sm:$0xff]
    %v139 = vld [vmem:[#allocation5 + $0x148] sm:$0xff]
    %v140 = vld [vmem:[#allocation5 + $0x150] sm:$0xff]
    %v141 = vld [vmem:[#allocation5 + $0x158] sm:$0xff]
    %v142 = vld [vmem:[#allocation5 + $0x160] sm:$0xff]
    %v143 = vld [vmem:[#allocation5 + $0x168] sm:$0xff]
    %v144 = vld [vmem:[#allocation5 + $0x170] sm:$0xff]
    %v145 = vld [vmem:[#allocation5 + $0x178] sm:$0xff]
    %v146 = vld [vmem:[#allocation7] sm:$0x7]
    %v148 = vperm.slane %v146, 0
    %v149 = vperm.slane %v146, 1
    %v150 = vperm.slane %v146, 2
    %154 = vmatpush.msra.mxu0 %v143
    %155 = vmatpush.msra.mxu0 %v140
    %156 = vmatpush.msra.mxu0 %v137
    %157 = vmatpush.msra.mxu0 %v134
    %158 = vmatpush.msra.mxu0 %v131
    %159 = vmatpush.msra.mxu0 %v128
    %160 = vmatpush.msra.mxu0 %v125
    %161 = vmatpush.msra.mxu0 %v122
    %162 = vmatpush.msra.mxu0 %v119
    %163 = vmatpush.msra.mxu0 %v116
    %164 = vmatpush.msra.mxu0 %v113
    %165 = vmatpush.msra.mxu0 %v110
    %166 = vmatpush.msra.mxu0 %v107
    %167 = vmatpush.msra.mxu0 %v104
    %168 = vmatpush.msra.mxu0 %v101
    %169 = vmatpush.msra.mxu0 %v98
    %170 = vmatmul.f32.gmra.mxu0 %v82
    %v171 = vpop.f32.mrf.mxu0
    %v172 = vadd.f32 %v148, %v171
    %173 = vmatmul.f32.gmra.mxu0 %v83
    %v174 = vpop.f32.mrf.mxu0
    %v175 = vadd.f32 %v148, %v174
    %176 = vmatmul.f32.gmra.mxu0 %v84
    %v177 = vpop.f32.mrf.mxu0
    %v178 = vadd.f32 %v148, %v177
    %179 = vmatmul.f32.gmra.mxu0 %v85
    %v180 = vpop.f32.mrf.mxu0
    %v181 = vadd.f32 %v148, %v180
    %182 = vmatmul.f32.gmra.mxu0 %v86
    %v183 = vpop.f32.mrf.mxu0
    %v184 = vadd.f32 %v148, %v183
    %185 = vmatmul.f32.gmra.mxu0 %v87
    %v186 = vpop.f32.mrf.mxu0
    %v187 = vadd.f32 %v148, %v186
    %188 = vmatmul.f32.gmra.mxu0 %v88
    %v189 = vpop.f32.mrf.mxu0
    %v190 = vadd.f32 %v148, %v189
    %191 = vmatmul.f32.gmra.mxu0 %v89
    %v192 = vpop.f32.mrf.mxu0
    %v193 = vadd.f32 %v148, %v192
    %194 = vmatmul.f32.gmra.mxu0 %v90
    %v195 = vpop.f32.mrf.mxu0
    %v196 = vadd.f32 %v148, %v195
    %197 = vmatmul.f32.gmra.mxu0 %v91
    %v198 = vpop.f32.mrf.mxu0
    %v199 = vadd.f32 %v148, %v198
    %200 = vmatmul.f32.gmra.mxu0 %v92
    %v201 = vpop.f32.mrf.mxu0
    %v202 = vadd.f32 %v148, %v201
    %203 = vmatmul.f32.gmra.mxu0 %v93
    %v204 = vpop.f32.mrf.mxu0
    %v205 = vadd.f32 %v148, %v204
    %206 = vmatmul.f32.gmra.mxu0 %v94
    %v207 = vpop.f32.mrf.mxu0
    %v208 = vadd.f32 %v148, %v207
    %209 = vmatmul.f32.gmra.mxu0 %v95
    %v210 = vpop.f32.mrf.mxu0
    %v211 = vadd.f32 %v148, %v210
    %212 = vmatmul.f32.gmra.mxu0 %v96
    %v213 = vpop.f32.mrf.mxu0
    %v214 = vadd.f32 %v148, %v213
    %215 = vmatmul.f32.gmra.mxu0 %v97
    %v216 = vpop.f32.mrf.mxu0
    %v217 = vadd.f32 %v148, %v216
    %218 = vdwg.mxu0
    %219 = vmatpush.msra.mxu0 %v144
    %220 = vmatpush.msra.mxu0 %v141
    %221 = vmatpush.msra.mxu0 %v138
    %222 = vmatpush.msra.mxu0 %v135
    %223 = vmatpush.msra.mxu0 %v132
    %224 = vmatpush.msra.mxu0 %v129
    %225 = vmatpush.msra.mxu0 %v126
    %226 = vmatpush.msra.mxu0 %v123
    %227 = vmatpush.msra.mxu0 %v120
    %228 = vmatpush.msra.mxu0 %v117
    %229 = vmatpush.msra.mxu0 %v114
    %230 = vmatpush.msra.mxu0 %v111
    %231 = vmatpush.msra.mxu0 %v108
    %232 = vmatpush.msra.mxu0 %v105
    %233 = vmatpush.msra.mxu0 %v102
    %234 = vmatpush.msra.mxu0 %v99
    %235 = vmatmul.f32.gmra.mxu0 %v82
    %v236 = vpop.f32.mrf.mxu0
    %v237 = vadd.f32 %v149, %v236
    %238 = vmatmul.f32.gmra.mxu0 %v83
    %v239 = vpop.f32.mrf.mxu0
    %v240 = vadd.f32 %v149, %v239
    %241 = vmatmul.f32.gmra.mxu0 %v84
    %v242 = vpop.f32.mrf.mxu0
    %v243 = vadd.f32 %v149, %v242
    %244 = vmatmul.f32.gmra.mxu0 %v85
    %v245 = vpop.f32.mrf.mxu0
    %v246 = vadd.f32 %v149, %v245
    %247 = vmatmul.f32.gmra.mxu0 %v86
    %v248 = vpop.f32.mrf.mxu0
    %v249 = vadd.f32 %v149, %v248
    %250 = vmatmul.f32.gmra.mxu0 %v87
    %v251 = vpop.f32.mrf.mxu0
    %v252 = vadd.f32 %v149, %v251
    %253 = vmatmul.f32.gmra.mxu0 %v88
    %v254 = vpop.f32.mrf.mxu0
    %v255 = vadd.f32 %v149, %v254
    %256 = vmatmul.f32.gmra.mxu0 %v89
    %v257 = vpop.f32.mrf.mxu0
    %v258 = vadd.f32 %v149, %v257
    %259 = vmatmul.f32.gmra.mxu0 %v90
    %v260 = vpop.f32.mrf.mxu0
    %v261 = vadd.f32 %v149, %v260
    %262 = vmatmul.f32.gmra.mxu0 %v91
    %v263 = vpop.f32.mrf.mxu0
    %v264 = vadd.f32 %v149, %v263
    %265 = vmatmul.f32.gmra.mxu0 %v92
    %v266 = vpop.f32.mrf.mxu0
    %v267 = vadd.f32 %v149, %v266
    %268 = vmatmul.f32.gmra.mxu0 %v93
    %v269 = vpop.f32.mrf.mxu0
    %v270 = vadd.f32 %v149, %v269
    %271 = vmatmul.f32.gmra.mxu0 %v94
    %v272 = vpop.f32.mrf.mxu0
    %v273 = vadd.f32 %v149, %v272
    %274 = vmatmul.f32.gmra.mxu0 %v95
    %v275 = vpop.f32.mrf.mxu0
    %v276 = vadd.f32 %v149, %v275
    %277 = vmatmul.f32.gmra.mxu0 %v96
    %v278 = vpop.f32.mrf.mxu0
    %v279 = vadd.f32 %v149, %v278
    %280 = vmatmul.f32.gmra.mxu0 %v97
    %v281 = vpop.f32.mrf.mxu0
    %v282 = vadd.f32 %v149, %v281
    %283 = vdwg.mxu0
    %284 = vmatpush.msra.mxu0 %v145
    %285 = vmatpush.msra.mxu0 %v142
    %286 = vmatpush.msra.mxu0 %v139
    %287 = vmatpush.msra.mxu0 %v136
    %288 = vmatpush.msra.mxu0 %v133
    %289 = vmatpush.msra.mxu0 %v130
    %290 = vmatpush.msra.mxu0 %v127
    %291 = vmatpush.msra.mxu0 %v124
    %292 = vmatpush.msra.mxu0 %v121
    %293 = vmatpush.msra.mxu0 %v118
    %294 = vmatpush.msra.mxu0 %v115
    %295 = vmatpush.msra.mxu0 %v112
    %296 = vmatpush.msra.mxu0 %v109
    %297 = vmatpush.msra.mxu0 %v106
    %298 = vmatpush.msra.mxu0 %v103
    %299 = vmatpush.msra.mxu0 %v100
    %300 = vmatmul.f32.gmra.mxu0 %v82
    %v301 = vpop.f32.mrf.mxu0
    %v302 = vadd.f32 %v150, %v301
    %303 = vmatmul.f32.gmra.mxu0 %v83
    %v304 = vpop.f32.mrf.mxu0
    %v305 = vadd.f32 %v150, %v304
    %306 = vmatmul.f32.gmra.mxu0 %v84
    %v307 = vpop.f32.mrf.mxu0
    %v308 = vadd.f32 %v150, %v307
    %309 = vmatmul.f32.gmra.mxu0 %v85
    %v310 = vpop.f32.mrf.mxu0
    %v311 = vadd.f32 %v150, %v310
    %312 = vmatmul.f32.gmra.mxu0 %v86
    %v313 = vpop.f32.mrf.mxu0
    %v314 = vadd.f32 %v150, %v313
    %315 = vmatmul.f32.gmra.mxu0 %v87
    %v316 = vpop.f32.mrf.mxu0
    %v317 = vadd.f32 %v150, %v316
    %318 = vmatmul.f32.gmra.mxu0 %v88
    %v319 = vpop.f32.mrf.mxu0
    %v320 = vadd.f32 %v150, %v319
    %321 = vmatmul.f32.gmra.mxu0 %v89
    %v322 = vpop.f32.mrf.mxu0
    %v323 = vadd.f32 %v150, %v322
    %324 = vmatmul.f32.gmra.mxu0 %v90
    %v325 = vpop.f32.mrf.mxu0
    %v326 = vadd.f32 %v150, %v325
    %327 = vmatmul.f32.gmra.mxu0 %v91
    %v328 = vpop.f32.mrf.mxu0
    %v329 = vadd.f32 %v150, %v328
    %330 = vmatmul.f32.gmra.mxu0 %v92
    %v331 = vpop.f32.mrf.mxu0
    %v332 = vadd.f32 %v150, %v331
    %333 = vmatmul.f32.gmra.mxu0 %v93
    %v334 = vpop.f32.mrf.mxu0
    %v335 = vadd.f32 %v150, %v334
    %336 = vmatmul.f32.gmra.mxu0 %v94
    %v337 = vpop.f32.mrf.mxu0
    %v338 = vadd.f32 %v150, %v337
    %339 = vmatmul.f32.gmra.mxu0 %v95
    %v340 = vpop.f32.mrf.mxu0
    %v341 = vadd.f32 %v150, %v340
    %342 = vmatmul.f32.gmra.mxu0 %v96
    %v343 = vpop.f32.mrf.mxu0
    %v344 = vadd.f32 %v150, %v343
    %345 = vmatmul.f32.gmra.mxu0 %v97
    %v346 = vpop.f32.mrf.mxu0
    %v347 = vadd.f32 %v150, %v346
    %348 = vdwg.mxu0
    %v349 = vld [vmem:[%s4] sm:$0x1]
    %v351 = vperm.slane %v349, 0
    %v353 = vadd.f32 %v82, %v351
    %v354 = vadd.f32 %v83, %v351
    %v355 = vadd.f32 %v84, %v351
    %v356 = vadd.f32 %v85, %v351
    %v357 = vadd.f32 %v86, %v351
    %v358 = vadd.f32 %v87, %v351
    %v359 = vadd.f32 %v88, %v351
    %v360 = vadd.f32 %v89, %v351
    %v361 = vadd.f32 %v90, %v351
    %v362 = vadd.f32 %v91, %v351
    %v363 = vadd.f32 %v92, %v351
    %v364 = vadd.f32 %v93, %v351
    %v365 = vadd.f32 %v94, %v351
    %v366 = vadd.f32 %v95, %v351
    %v367 = vadd.f32 %v96, %v351
    %v368 = vadd.f32 %v97, %v351
    %vm369 = vcmask 261120
    %v371 = vsel %vm369, %v172, 0
    %v374 = vsel %vm369, %v175, 0
    %v377 = vsel %vm369, %v178, 0
    %v380 = vsel %vm369, %v181, 0
    %v383 = vsel %vm369, %v184, 0
    %v386 = vsel %vm369, %v187, 0
    %v389 = vsel %vm369, %v190, 0
    %v392 = vsel %vm369, %v193, 0
    %v395 = vsel %vm369, %v237, 0
    %v398 = vsel %vm369, %v240, 0
    %v401 = vsel %vm369, %v243, 0
    %v404 = vsel %vm369, %v246, 0
    %v407 = vsel %vm369, %v249, 0
    %v410 = vsel %vm369, %v252, 0
    %v413 = vsel %vm369, %v255, 0
    %v416 = vsel %vm369, %v258, 0
    %418 = vmatpush.xpose.msra.mxu0 0.0
    %419 = vmatpush.xpose.msra.mxu0 0.0
    %420 = vmatpush.xpose.msra.mxu0 0.0
    %421 = vmatpush.xpose.msra.mxu0 0.0
    %422 = vmatpush.xpose.msra.mxu0 0.0
    %423 = vmatpush.xpose.msra.mxu0 0.0
    %424 = vmatpush.xpose.msra.mxu0 0.0
    %425 = vmatpush.xpose.msra.mxu0 0.0
    %426 = vmatpush.xpose.msra.mxu0 %v416
    %427 = vmatpush.xpose.msra.mxu0 %v413
    %428 = vmatpush.xpose.msra.mxu0 %v410
    %429 = vmatpush.xpose.msra.mxu0 %v407
    %430 = vmatpush.xpose.msra.mxu0 %v404
    %431 = vmatpush.xpose.msra.mxu0 %v401
    %432 = vmatpush.xpose.msra.mxu0 %v398
    %433 = vmatpush.xpose.msra.mxu0 %v395
    %434 = vmatmul.f32.gmra.mxu0 %v371
    %v435 = vpop.f32.mrf.mxu0
    %v436 = vadd.f32 0.0, %v435
    %437 = vmatmul.f32.gmra.mxu0 %v374
    %v438 = vpop.f32.mrf.mxu0
    %v439 = vadd.f32 0.0, %v438
    %440 = vmatmul.f32.gmra.mxu0 %v377
    %v441 = vpop.f32.mrf.mxu0
    %v442 = vadd.f32 0.0, %v441
    %443 = vmatmul.f32.gmra.mxu0 %v380
    %v444 = vpop.f32.mrf.mxu0
    %v445 = vadd.f32 0.0, %v444
    %446 = vmatmul.f32.gmra.mxu0 %v383
    %v447 = vpop.f32.mrf.mxu0
    %v448 = vadd.f32 0.0, %v447
    %449 = vmatmul.f32.gmra.mxu0 %v386
    %v450 = vpop.f32.mrf.mxu0
    %v451 = vadd.f32 0.0, %v450
    %452 = vmatmul.f32.gmra.mxu0 %v389
    %v453 = vpop.f32.mrf.mxu0
    %v454 = vadd.f32 0.0, %v453
    %455 = vmatmul.f32.gmra.mxu0 %v392
    %v456 = vpop.f32.mrf.mxu0
    %v457 = vadd.f32 0.0, %v456
    %458 = vdwg.mxu0
    %v460 = vsel %vm369, %v196, 0
    %v463 = vsel %vm369, %v199, 0
    %v466 = vsel %vm369, %v202, 0
    %v469 = vsel %vm369, %v205, 0
    %v472 = vsel %vm369, %v208, 0
    %v475 = vsel %vm369, %v211, 0
    %v478 = vsel %vm369, %v214, 0
    %v481 = vsel %vm369, %v217, 0
    %v484 = vsel %vm369, %v261, 0
    %v487 = vsel %vm369, %v264, 0
    %v490 = vsel %vm369, %v267, 0
    %v493 = vsel %vm369, %v270, 0
    %v496 = vsel %vm369, %v273, 0
    %v499 = vsel %vm369, %v276, 0
    %v502 = vsel %vm369, %v279, 0
    %v505 = vsel %vm369, %v282, 0
    %507 = vmatpush.xpose.msra.mxu0 0.0
    %508 = vmatpush.xpose.msra.mxu0 0.0
    %509 = vmatpush.xpose.msra.mxu0 0.0
    %510 = vmatpush.xpose.msra.mxu0 0.0
    %511 = vmatpush.xpose.msra.mxu0 0.0
    %512 = vmatpush.xpose.msra.mxu0 0.0
    %513 = vmatpush.xpose.msra.mxu0 0.0
    %514 = vmatpush.xpose.msra.mxu0 0.0
    %515 = vmatpush.xpose.msra.mxu0 %v505
    %516 = vmatpush.xpose.msra.mxu0 %v502
    %517 = vmatpush.xpose.msra.mxu0 %v499
    %518 = vmatpush.xpose.msra.mxu0 %v496
    %519 = vmatpush.xpose.msra.mxu0 %v493
    %520 = vmatpush.xpose.msra.mxu0 %v490
    %521 = vmatpush.xpose.msra.mxu0 %v487
    %522 = vmatpush.xpose.msra.mxu0 %v484
    %523 = vmatmul.f32.gmra.mxu0 %v460
    %v524 = vpop.f32.mrf.mxu0
    %v525 = vadd.f32 0.0, %v524
    %526 = vmatmul.f32.gmra.mxu0 %v463
    %v527 = vpop.f32.mrf.mxu0
    %v528 = vadd.f32 0.0, %v527
    %529 = vmatmul.f32.gmra.mxu0 %v466
    %v530 = vpop.f32.mrf.mxu0
    %v531 = vadd.f32 0.0, %v530
    %532 = vmatmul.f32.gmra.mxu0 %v469
    %v533 = vpop.f32.mrf.mxu0
    %v534 = vadd.f32 0.0, %v533
    %535 = vmatmul.f32.gmra.mxu0 %v472
    %v536 = vpop.f32.mrf.mxu0
    %v537 = vadd.f32 0.0, %v536
    %538 = vmatmul.f32.gmra.mxu0 %v475
    %v539 = vpop.f32.mrf.mxu0
    %v540 = vadd.f32 0.0, %v539
    %541 = vmatmul.f32.gmra.mxu0 %v478
    %v542 = vpop.f32.mrf.mxu0
    %v543 = vadd.f32 0.0, %v542
    %544 = vmatmul.f32.gmra.mxu0 %v481
    %v545 = vpop.f32.mrf.mxu0
    %v546 = vadd.f32 0.0, %v545
    %547 = vdwg.mxu0
    %vm548 = vcmask 523264
    %v549 = vsel %vm548, %v436, -inf
    %550 = vmax.xlane.f32.xlu0 %v549
    %v551 = vpop.xlane.xlu0 %550
    %v552 = vsel %vm548, %v439, -inf
    %553 = vmax.xlane.f32.xlu0 %v552
    %v554 = vpop.xlane.xlu0 %553
    %v555 = vsel %vm548, %v442, -inf
    %556 = vmax.xlane.f32.xlu0 %v555
    %v557 = vpop.xlane.xlu0 %556
    %v558 = vsel %vm548, %v445, -inf
    %559 = vmax.xlane.f32.xlu0 %v558
    %v560 = vpop.xlane.xlu0 %559
    %v561 = vsel %vm548, %v448, -inf
    %562 = vmax.xlane.f32.xlu0 %v561
    %v563 = vpop.xlane.xlu0 %562
    %v564 = vsel %vm548, %v451, -inf
    %565 = vmax.xlane.f32.xlu0 %v564
    %v566 = vpop.xlane.xlu0 %565
    %v567 = vsel %vm548, %v454, -inf
    %568 = vmax.xlane.f32.xlu0 %v567
    %v569 = vpop.xlane.xlu0 %568
    %v570 = vsel %vm548, %v457, -inf
    %571 = vmax.xlane.f32.xlu0 %v570
    %v572 = vpop.xlane.xlu0 %571
    %v573 = vsel %vm548, %v525, -inf
    %574 = vmax.xlane.f32.xlu0 %v573
    %v575 = vpop.xlane.xlu0 %574
    %v576 = vsel %vm548, %v528, -inf
    %577 = vmax.xlane.f32.xlu0 %v576
    %v578 = vpop.xlane.xlu0 %577
    %v579 = vsel %vm548, %v531, -inf
    %580 = vmax.xlane.f32.xlu0 %v579
    %v581 = vpop.xlane.xlu0 %580
    %v582 = vsel %vm548, %v534, -inf
    %583 = vmax.xlane.f32.xlu0 %v582
    %v584 = vpop.xlane.xlu0 %583
    %v585 = vsel %vm548, %v537, -inf
    %586 = vmax.xlane.f32.xlu0 %v585
    %v587 = vpop.xlane.xlu0 %586
    %v588 = vsel %vm548, %v540, -inf
    %589 = vmax.xlane.f32.xlu0 %v588
    %v590 = vpop.xlane.xlu0 %589
    %v591 = vsel %vm548, %v543, -inf
    %592 = vmax.xlane.f32.xlu0 %v591
    %v593 = vpop.xlane.xlu0 %592
    %v594 = vsel %vm548, %v546, -inf
    %595 = vmax.xlane.f32.xlu0 %v594
    %v596 = vpop.xlane.xlu0 %595
    %v597 = vsub.f32 %v436, %v551
    %v598 = vsub.f32 %v439, %v554
    %v599 = vsub.f32 %v442, %v557
    %v600 = vsub.f32 %v445, %v560
    %v601 = vsub.f32 %v448, %v563
    %v602 = vsub.f32 %v451, %v566
    %v603 = vsub.f32 %v454, %v569
    %v604 = vsub.f32 %v457, %v572
    %v605 = vsub.f32 %v525, %v575
    %v606 = vsub.f32 %v528, %v578
    %v607 = vsub.f32 %v531, %v581
    %v608 = vsub.f32 %v534, %v584
    %v609 = vsub.f32 %v537, %v587
    %v610 = vsub.f32 %v540, %v590
    %v611 = vsub.f32 %v543, %v593
    %v612 = vsub.f32 %v546, %v596
    %v613 = vmul.f32 %v597, 1.442695
    %v614 = vpow.pop %v613
    %v615 = vmul.f32 %v598, 1.442695
    %v616 = vpow.pop %v615
    %v617 = vmul.f32 %v599, 1.442695
    %v618 = vpow.pop %v617
    %v619 = vmul.f32 %v600, 1.442695
    %v620 = vpow.pop %v619
    %v621 = vmul.f32 %v601, 1.442695
    %v622 = vpow.pop %v621
    %v623 = vmul.f32 %v602, 1.442695
    %v624 = vpow.pop %v623
    %v625 = vmul.f32 %v603, 1.442695
    %v626 = vpow.pop %v625
    %v627 = vmul.f32 %v604, 1.442695
    %v628 = vpow.pop %v627
    %v629 = vmul.f32 %v605, 1.442695
    %v630 = vpow.pop %v629
    %v631 = vmul.f32 %v606, 1.442695
    %v632 = vpow.pop %v631
    %v633 = vmul.f32 %v607, 1.442695
    %v634 = vpow.pop %v633
    %v635 = vmul.f32 %v608, 1.442695
    %v636 = vpow.pop %v635
    %v637 = vmul.f32 %v609, 1.442695
    %v638 = vpow.pop %v637
    %v639 = vmul.f32 %v610, 1.442695
    %v640 = vpow.pop %v639
    %v641 = vmul.f32 %v611, 1.442695
    %v642 = vpow.pop %v641
    %v643 = vmul.f32 %v612, 1.442695
    %v644 = vpow.pop %v643
    %v645 = vsel %vm548, %v614, 0.0
    %646 = vadd.xlane.f32.xlu0 %v645
    %v647 = vpop.xlane.xlu0 %646
    %v648 = vsel %vm548, %v616, 0.0
    %649 = vadd.xlane.f32.xlu0 %v648
    %v650 = vpop.xlane.xlu0 %649
    %v651 = vsel %vm548, %v618, 0.0
    %652 = vadd.xlane.f32.xlu0 %v651
    %v653 = vpop.xlane.xlu0 %652
    %v654 = vsel %vm548, %v620, 0.0
    %655 = vadd.xlane.f32.xlu0 %v654
    %v656 = vpop.xlane.xlu0 %655
    %v657 = vsel %vm548, %v622, 0.0
    %658 = vadd.xlane.f32.xlu0 %v657
    %v659 = vpop.xlane.xlu0 %658
    %v660 = vsel %vm548, %v624, 0.0
    %661 = vadd.xlane.f32.xlu0 %v660
    %v662 = vpop.xlane.xlu0 %661
    %v663 = vsel %vm548, %v626, 0.0
    %664 = vadd.xlane.f32.xlu0 %v663
    %v665 = vpop.xlane.xlu0 %664
    %v666 = vsel %vm548, %v628, 0.0
    %667 = vadd.xlane.f32.xlu0 %v666
    %v668 = vpop.xlane.xlu0 %667
    %v669 = vsel %vm548, %v630, 0.0
    %670 = vadd.xlane.f32.xlu0 %v669
    %v671 = vpop.xlane.xlu0 %670
    %v672 = vsel %vm548, %v632, 0.0
    %673 = vadd.xlane.f32.xlu0 %v672
    %v674 = vpop.xlane.xlu0 %673
    %v675 = vsel %vm548, %v634, 0.0
    %676 = vadd.xlane.f32.xlu0 %v675
    %v677 = vpop.xlane.xlu0 %676
    %v678 = vsel %vm548, %v636, 0.0
    %679 = vadd.xlane.f32.xlu0 %v678
    %v680 = vpop.xlane.xlu0 %679
    %v681 = vsel %vm548, %v638, 0.0
    %682 = vadd.xlane.f32.xlu0 %v681
    %v683 = vpop.xlane.xlu0 %682
    %v684 = vsel %vm548, %v640, 0.0
    %685 = vadd.xlane.f32.xlu0 %v684
    %v686 = vpop.xlane.xlu0 %685
    %v687 = vsel %vm548, %v642, 0.0
    %688 = vadd.xlane.f32.xlu0 %v687
    %v689 = vpop.xlane.xlu0 %688
    %v690 = vsel %vm548, %v644, 0.0
    %691 = vadd.xlane.f32.xlu0 %v690
    %v692 = vpop.xlane.xlu0 %691
    %v694 = vsel %vm548, %v614, 0
    %v697 = vsel %vm548, %v616, 0
    %v700 = vsel %vm548, %v618, 0
    %v703 = vsel %vm548, %v620, 0
    %v706 = vsel %vm548, %v622, 0
    %v709 = vsel %vm548, %v624, 0
    %v712 = vsel %vm548, %v626, 0
    %v715 = vsel %vm548, %v628, 0
    %717 = vmatpush.msra.mxu0 0.0
    %718 = vmatpush.msra.mxu0 0.0
    %719 = vmatpush.msra.mxu0 0.0
    %720 = vmatpush.msra.mxu0 0.0
    %721 = vmatpush.msra.mxu0 0.0
    %722 = vmatpush.msra.mxu0 0.0
    %723 = vmatpush.msra.mxu0 0.0
    %724 = vmatpush.msra.mxu0 0.0
    %725 = vmatpush.msra.mxu0 %v323
    %726 = vmatpush.msra.mxu0 %v320
    %727 = vmatpush.msra.mxu0 %v317
    %728 = vmatpush.msra.mxu0 %v314
    %729 = vmatpush.msra.mxu0 %v311
    %730 = vmatpush.msra.mxu0 %v308
    %731 = vmatpush.msra.mxu0 %v305
    %732 = vmatpush.msra.mxu0 %v302
    %733 = vmatmul.f32.gmra.mxu0 %v694
    %v734 = vpop.f32.mrf.mxu0
    %v735 = vadd.f32 0.0, %v734
    %736 = vmatmul.f32.gmra.mxu0 %v697
    %v737 = vpop.f32.mrf.mxu0
    %v738 = vadd.f32 0.0, %v737
    %739 = vmatmul.f32.gmra.mxu0 %v700
    %v740 = vpop.f32.mrf.mxu0
    %v741 = vadd.f32 0.0, %v740
    %742 = vmatmul.f32.gmra.mxu0 %v703
    %v743 = vpop.f32.mrf.mxu0
    %v744 = vadd.f32 0.0, %v743
    %745 = vmatmul.f32.gmra.mxu0 %v706
    %v746 = vpop.f32.mrf.mxu0
    %v747 = vadd.f32 0.0, %v746
    %748 = vmatmul.f32.gmra.mxu0 %v709
    %v749 = vpop.f32.mrf.mxu0
    %v750 = vadd.f32 0.0, %v749
    %751 = vmatmul.f32.gmra.mxu0 %v712
    %v752 = vpop.f32.mrf.mxu0
    %v753 = vadd.f32 0.0, %v752
    %754 = vmatmul.f32.gmra.mxu0 %v715
    %v755 = vpop.f32.mrf.mxu0
    %v756 = vadd.f32 0.0, %v755
    %757 = vdwg.mxu0
    %v759 = vsel %vm548, %v630, 0
    %v762 = vsel %vm548, %v632, 0
    %v765 = vsel %vm548, %v634, 0
    %v768 = vsel %vm548, %v636, 0
    %v771 = vsel %vm548, %v638, 0
    %v774 = vsel %vm548, %v640, 0
    %v777 = vsel %vm548, %v642, 0
    %v780 = vsel %vm548, %v644, 0
    %782 = vmatpush.msra.mxu0 0.0
    %783 = vmatpush.msra.mxu0 0.0
    %784 = vmatpush.msra.mxu0 0.0
    %785 = vmatpush.msra.mxu0 0.0
    %786 = vmatpush.msra.mxu0 0.0
    %787 = vmatpush.msra.mxu0 0.0
    %788 = vmatpush.msra.mxu0 0.0
    %789 = vmatpush.msra.mxu0 0.0
    %790 = vmatpush.msra.mxu0 %v347
    %791 = vmatpush.msra.mxu0 %v344
    %792 = vmatpush.msra.mxu0 %v341
    %793 = vmatpush.msra.mxu0 %v338
    %794 = vmatpush.msra.mxu0 %v335
    %795 = vmatpush.msra.mxu0 %v332
    %796 = vmatpush.msra.mxu0 %v329
    %797 = vmatpush.msra.mxu0 %v326
    %798 = vmatmul.f32.gmra.mxu0 %v759
    %v799 = vpop.f32.mrf.mxu0
    %v800 = vadd.f32 0.0, %v799
    %801 = vmatmul.f32.gmra.mxu0 %v762
    %v802 = vpop.f32.mrf.mxu0
    %v803 = vadd.f32 0.0, %v802
    %804 = vmatmul.f32.gmra.mxu0 %v765
    %v805 = vpop.f32.mrf.mxu0
    %v806 = vadd.f32 0.0, %v805
    %807 = vmatmul.f32.gmra.mxu0 %v768
    %v808 = vpop.f32.mrf.mxu0
    %v809 = vadd.f32 0.0, %v808
    %810 = vmatmul.f32.gmra.mxu0 %v771
    %v811 = vpop.f32.mrf.mxu0
    %v812 = vadd.f32 0.0, %v811
    %813 = vmatmul.f32.gmra.mxu0 %v774
    %v814 = vpop.f32.mrf.mxu0
    %v815 = vadd.f32 0.0, %v814
    %816 = vmatmul.f32.gmra.mxu0 %v777
    %v817 = vpop.f32.mrf.mxu0
    %v818 = vadd.f32 0.0, %v817
    %819 = vmatmul.f32.gmra.mxu0 %v780
    %v820 = vpop.f32.mrf.mxu0
    %v821 = vadd.f32 0.0, %v820
    %822 = vdwg.mxu0
    %v823 = vrcp.pop %v647
    %v824 = vrcp.pop %v650
    %v825 = vrcp.pop %v653
    %v826 = vrcp.pop %v656
    %v827 = vrcp.pop %v659
    %v828 = vrcp.pop %v662
    %v829 = vrcp.pop %v665
    %v830 = vrcp.pop %v668
    %v831 = vrcp.pop %v671
    %v832 = vrcp.pop %v674
    %v833 = vrcp.pop %v677
    %v834 = vrcp.pop %v680
    %v835 = vrcp.pop %v683
    %v836 = vrcp.pop %v686
    %v837 = vrcp.pop %v689
    %v838 = vrcp.pop %v692
    %v839 = vmul.f32 %v735, %v823
    %v840 = vmul.f32 %v738, %v824
    %v841 = vmul.f32 %v741, %v825
    %v842 = vmul.f32 %v744, %v826
    %v843 = vmul.f32 %v747, %v827
    %v844 = vmul.f32 %v750, %v828
    %v845 = vmul.f32 %v753, %v829
    %v846 = vmul.f32 %v756, %v830
    %v847 = vmul.f32 %v800, %v831
    %v848 = vmul.f32 %v803, %v832
    %v849 = vmul.f32 %v806, %v833
    %v850 = vmul.f32 %v809, %v834
    %v851 = vmul.f32 %v812, %v835
    %v852 = vmul.f32 %v815, %v836
    %v853 = vmul.f32 %v818, %v837
    %v854 = vmul.f32 %v821, %v838
    %v855 = vld [vmem:[#allocation8] sm:$0xff]
    %v856 = vld [vmem:[#allocation8 + $0x8] sm:$0xff]
    %v857 = vld [vmem:[#allocation8 + $0x10] sm:$0xff]
    %v858 = vld [vmem:[#allocation8 + $0x18] sm:$0xff]
    %v860 = vsel %vm369, %v839, 0
    %v863 = vsel %vm369, %v840, 0
    %v866 = vsel %vm369, %v841, 0
    %v869 = vsel %vm369, %v842, 0
    %v872 = vsel %vm369, %v843, 0
    %v875 = vsel %vm369, %v844, 0
    %v878 = vsel %vm369, %v845, 0
    %v881 = vsel %vm369, %v846, 0
    %v884 = vsel %vm369, %v847, 0
    %v887 = vsel %vm369, %v848, 0
    %v890 = vsel %vm369, %v849, 0
    %v893 = vsel %vm369, %v850, 0
    %v896 = vsel %vm369, %v851, 0
    %v899 = vsel %vm369, %v852, 0
    %v902 = vsel %vm369, %v853, 0
    %v905 = vsel %vm369, %v854, 0
    %907 = vmatpush.msra.mxu0 0.0
    %908 = vmatpush.msra.mxu0 0.0
    %909 = vmatpush.msra.mxu0 0.0
    %910 = vmatpush.msra.mxu0 0.0
    %911 = vmatpush.msra.mxu0 0.0
    %912 = vmatpush.msra.mxu0 0.0
    %913 = vmatpush.msra.mxu0 0.0
    %914 = vmatpush.msra.mxu0 0.0
    %915 = vmatpush.msra.mxu0 0.0
    %916 = vmatpush.msra.mxu0 0.0
    %917 = vmatpush.msra.mxu0 0.0
    %918 = vmatpush.msra.mxu0 0.0
    %919 = vmatpush.msra.mxu0 %v858
    %920 = vmatpush.msra.mxu0 %v857
    %921 = vmatpush.msra.mxu0 %v856
    %922 = vmatpush.msra.mxu0 %v855
    %923 = vmatmul.f32.gmra.mxu0 %v860
    %v924 = vpop.f32.mrf.mxu0
    %v925 = vadd.f32 0.0, %v924
    %926 = vmatmul.f32.gmra.mxu0 %v863
    %v927 = vpop.f32.mrf.mxu0
    %v928 = vadd.f32 0.0, %v927
    %929 = vmatmul.f32.gmra.mxu0 %v866
    %v930 = vpop.f32.mrf.mxu0
    %v931 = vadd.f32 0.0, %v930
    %932 = vmatmul.f32.gmra.mxu0 %v869
    %v933 = vpop.f32.mrf.mxu0
    %v934 = vadd.f32 0.0, %v933
    %935 = vmatmul.f32.gmra.mxu0 %v872
    %v936 = vpop.f32.mrf.mxu0
    %v937 = vadd.f32 0.0, %v936
    %938 = vmatmul.f32.gmra.mxu0 %v875
    %v939 = vpop.f32.mrf.mxu0
    %v940 = vadd.f32 0.0, %v939
    %941 = vmatmul.f32.gmra.mxu0 %v878
    %v942 = vpop.f32.mrf.mxu0
    %v943 = vadd.f32 0.0, %v942
    %944 = vmatmul.f32.gmra.mxu0 %v881
    %v945 = vpop.f32.mrf.mxu0
    %v946 = vadd.f32 0.0, %v945
    %947 = vmatmul.f32.gmra.mxu0 %v884
    %v948 = vpop.f32.mrf.mxu0
    %v949 = vadd.f32 0.0, %v948
    %950 = vmatmul.f32.gmra.mxu0 %v887
    %v951 = vpop.f32.mrf.mxu0
    %v952 = vadd.f32 0.0, %v951
    %953 = vmatmul.f32.gmra.mxu0 %v890
    %v954 = vpop.f32.mrf.mxu0
    %v955 = vadd.f32 0.0, %v954
    %956 = vmatmul.f32.gmra.mxu0 %v893
    %v957 = vpop.f32.mrf.mxu0
    %v958 = vadd.f32 0.0, %v957
    %959 = vmatmul.f32.gmra.mxu0 %v896
    %v960 = vpop.f32.mrf.mxu0
    %v961 = vadd.f32 0.0, %v960
    %962 = vmatmul.f32.gmra.mxu0 %v899
    %v963 = vpop.f32.mrf.mxu0
    %v964 = vadd.f32 0.0, %v963
    %965 = vmatmul.f32.gmra.mxu0 %v902
    %v966 = vpop.f32.mrf.mxu0
    %v967 = vadd.f32 0.0, %v966
    %968 = vmatmul.f32.gmra.mxu0 %v905
    %v969 = vpop.f32.mrf.mxu0
    %v970 = vadd.f32 0.0, %v969
    %971 = vdwg.mxu0
    %v972 = vadd.f32 %v353, %v925
    %v973 = vadd.f32 %v354, %v928
    %v974 = vadd.f32 %v355, %v931
    %v975 = vadd.f32 %v356, %v934
    %v976 = vadd.f32 %v357, %v937
    %v977 = vadd.f32 %v358, %v940
    %v978 = vadd.f32 %v359, %v943
    %v979 = vadd.f32 %v360, %v946
    %v980 = vadd.f32 %v361, %v949
    %v981 = vadd.f32 %v362, %v952
    %v982 = vadd.f32 %v363, %v955
    %v983 = vadd.f32 %v364, %v958
    %v984 = vadd.f32 %v365, %v961
    %v985 = vadd.f32 %v366, %v964
    %v986 = vadd.f32 %v367, %v967
    %v987 = vadd.f32 %v368, %v970
    %988 = vrot.lane.b32.xlu0 %v172, 96
    %v989 = vpop.permute.xlu0 %988
    %990 = vrot.lane.b32.xlu0 %v175, 96
    %v991 = vpop.permute.xlu0 %990
    %992 = vrot.lane.b32.xlu0 %v178, 96
    %v993 = vpop.permute.xlu0 %992
    %994 = vrot.lane.b32.xlu0 %v181, 96
    %v995 = vpop.permute.xlu0 %994
    %996 = vrot.lane.b32.xlu0 %v184, 96
    %v997 = vpop.permute.xlu0 %996
    %998 = vrot.lane.b32.xlu0 %v187, 96
    %v999 = vpop.permute.xlu0 %998
    %1000 = vrot.lane.b32.xlu0 %v190, 96
    %v1001 = vpop.permute.xlu0 %1000
    %1002 = vrot.lane.b32.xlu0 %v193, 96
    %v1003 = vpop.permute.xlu0 %1002
    %1004 = vrot.lane.b32.xlu0 %v237, 96
    %v1005 = vpop.permute.xlu0 %1004
    %1006 = vrot.lane.b32.xlu0 %v240, 96
    %v1007 = vpop.permute.xlu0 %1006
    %1008 = vrot.lane.b32.xlu0 %v243, 96
    %v1009 = vpop.permute.xlu0 %1008
    %1010 = vrot.lane.b32.xlu0 %v246, 96
    %v1011 = vpop.permute.xlu0 %1010
    %1012 = vrot.lane.b32.xlu0 %v249, 96
    %v1013 = vpop.permute.xlu0 %1012
    %1014 = vrot.lane.b32.xlu0 %v252, 96
    %v1015 = vpop.permute.xlu0 %1014
    %1016 = vrot.lane.b32.xlu0 %v255, 96
    %v1017 = vpop.permute.xlu0 %1016
    %1018 = vrot.lane.b32.xlu0 %v258, 96
    %v1019 = vpop.permute.xlu0 %1018
    %v1020 = vsel %vm369, %v989, 0
    %v1022 = vsel %vm369, %v991, 0
    %v1024 = vsel %vm369, %v993, 0
    %v1026 = vsel %vm369, %v995, 0
    %v1028 = vsel %vm369, %v997, 0
    %v1030 = vsel %vm369, %v999, 0
    %v1032 = vsel %vm369, %v1001, 0
    %v1034 = vsel %vm369, %v1003, 0
    %v1036 = vsel %vm369, %v1005, 0
    %v1038 = vsel %vm369, %v1007, 0
    %v1040 = vsel %vm369, %v1009, 0
    %v1042 = vsel %vm369, %v1011, 0
    %v1044 = vsel %vm369, %v1013, 0
    %v1046 = vsel %vm369, %v1015, 0
    %v1048 = vsel %vm369, %v1017, 0
    %v1050 = vsel %vm369, %v1019, 0
    %1052 = vmatpush.xpose.msra.mxu0 0.0
    %1053 = vmatpush.xpose.msra.mxu0 0.0
    %1054 = vmatpush.xpose.msra.mxu0 0.0
    %1055 = vmatpush.xpose.msra.mxu0 0.0
    %1056 = vmatpush.xpose.msra.mxu0 0.0
    %1057 = vmatpush.xpose.msra.mxu0 0.0
    %1058 = vmatpush.xpose.msra.mxu0 0.0
    %1059 = vmatpush.xpose.msra.mxu0 0.0
    %1060 = vmatpush.xpose.msra.mxu0 %v1050
    %1061 = vmatpush.xpose.msra.mxu0 %v1048
    %1062 = vmatpush.xpose.msra.mxu0 %v1046
    %1063 = vmatpush.xpose.msra.mxu0 %v1044
    %1064 = vmatpush.xpose.msra.mxu0 %v1042
    %1065 = vmatpush.xpose.msra.mxu0 %v1040
    %1066 = vmatpush.xpose.msra.mxu0 %v1038
    %1067 = vmatpush.xpose.msra.mxu0 %v1036
    %1068 = vmatmul.f32.gmra.mxu0 %v1020
    %v1069 = vpop.f32.mrf.mxu0
    %v1070 = vadd.f32 0.0, %v1069
    %1071 = vmatmul.f32.gmra.mxu0 %v1022
    %v1072 = vpop.f32.mrf.mxu0
    %v1073 = vadd.f32 0.0, %v1072
    %1074 = vmatmul.f32.gmra.mxu0 %v1024
    %v1075 = vpop.f32.mrf.mxu0
    %v1076 = vadd.f32 0.0, %v1075
    %1077 = vmatmul.f32.gmra.mxu0 %v1026
    %v1078 = vpop.f32.mrf.mxu0
    %v1079 = vadd.f32 0.0, %v1078
    %1080 = vmatmul.f32.gmra.mxu0 %v1028
    %v1081 = vpop.f32.mrf.mxu0
    %v1082 = vadd.f32 0.0, %v1081
    %1083 = vmatmul.f32.gmra.mxu0 %v1030
    %v1084 = vpop.f32.mrf.mxu0
    %v1085 = vadd.f32 0.0, %v1084
    %1086 = vmatmul.f32.gmra.mxu0 %v1032
    %v1087 = vpop.f32.mrf.mxu0
    %v1088 = vadd.f32 0.0, %v1087
    %1089 = vmatmul.f32.gmra.mxu0 %v1034
    %v1090 = vpop.f32.mrf.mxu0
    %v1091 = vadd.f32 0.0, %v1090
    %1092 = vdwg.mxu0
    %1093 = vrot.lane.b32.xlu0 %v196, 96
    %v1094 = vpop.permute.xlu0 %1093
    %1095 = vrot.lane.b32.xlu0 %v199, 96
    %v1096 = vpop.permute.xlu0 %1095
    %1097 = vrot.lane.b32.xlu0 %v202, 96
    %v1098 = vpop.permute.xlu0 %1097
    %1099 = vrot.lane.b32.xlu0 %v205, 96
    %v1100 = vpop.permute.xlu0 %1099
    %1101 = vrot.lane.b32.xlu0 %v208, 96
    %v1102 = vpop.permute.xlu0 %1101
    %1103 = vrot.lane.b32.xlu0 %v211, 96
    %v1104 = vpop.permute.xlu0 %1103
    %1105 = vrot.lane.b32.xlu0 %v214, 96
    %v1106 = vpop.permute.xlu0 %1105
    %1107 = vrot.lane.b32.xlu0 %v217, 96
    %v1108 = vpop.permute.xlu0 %1107
    %1109 = vrot.lane.b32.xlu0 %v261, 96
    %v1110 = vpop.permute.xlu0 %1109
    %1111 = vrot.lane.b32.xlu0 %v264, 96
    %v1112 = vpop.permute.xlu0 %1111
    %1113 = vrot.lane.b32.xlu0 %v267, 96
    %v1114 = vpop.permute.xlu0 %1113
    %1115 = vrot.lane.b32.xlu0 %v270, 96
    %v1116 = vpop.permute.xlu0 %1115
    %1117 = vrot.lane.b32.xlu0 %v273, 96
    %v1118 = vpop.permute.xlu0 %1117
    %1119 = vrot.lane.b32.xlu0 %v276, 96
    %v1120 = vpop.permute.xlu0 %1119
    %1121 = vrot.lane.b32.xlu0 %v279, 96
    %v1122 = vpop.permute.xlu0 %1121
    %1123 = vrot.lane.b32.xlu0 %v282, 96
    %v1124 = vpop.permute.xlu0 %1123
    %v1125 = vsel %vm369, %v1094, 0
    %v1127 = vsel %vm369, %v1096, 0
    %v1129 = vsel %vm369, %v1098, 0
    %v1131 = vsel %vm369, %v1100, 0
    %v1133 = vsel %vm369, %v1102, 0
    %v1135 = vsel %vm369, %v1104, 0
    %v1137 = vsel %vm369, %v1106, 0
    %v1139 = vsel %vm369, %v1108, 0
    %v1141 = vsel %vm369, %v1110, 0
    %v1143 = vsel %vm369, %v1112, 0
    %v1145 = vsel %vm369, %v1114, 0
    %v1147 = vsel %vm369, %v1116, 0
    %v1149 = vsel %vm369, %v1118, 0
    %v1151 = vsel %vm369, %v1120, 0
    %v1153 = vsel %vm369, %v1122, 0
    %v1155 = vsel %vm369, %v1124, 0
    %1157 = vmatpush.xpose.msra.mxu0 0.0
    %1158 = vmatpush.xpose.msra.mxu0 0.0
    %1159 = vmatpush.xpose.msra.mxu0 0.0
    %1160 = vmatpush.xpose.msra.mxu0 0.0
    %1161 = vmatpush.xpose.msra.mxu0 0.0
    %1162 = vmatpush.xpose.msra.mxu0 0.0
    %1163 = vmatpush.xpose.msra.mxu0 0.0
    %1164 = vmatpush.xpose.msra.mxu0 0.0
    %1165 = vmatpush.xpose.msra.mxu0 %v1155
    %1166 = vmatpush.xpose.msra.mxu0 %v1153
    %1167 = vmatpush.xpose.msra.mxu0 %v1151
    %1168 = vmatpush.xpose.msra.mxu0 %v1149
    %1169 = vmatpush.xpose.msra.mxu0 %v1147
    %1170 = vmatpush.xpose.msra.mxu0 %v1145
    %1171 = vmatpush.xpose.msra.mxu0 %v1143
    %1172 = vmatpush.xpose.msra.mxu0 %v1141
    %1173 = vmatmul.f32.gmra.mxu0 %v1125
    %v1174 = vpop.f32.mrf.mxu0
    %v1175 = vadd.f32 0.0, %v1174
    %1176 = vmatmul.f32.gmra.mxu0 %v1127
    %v1177 = vpop.f32.mrf.mxu0
    %v1178 = vadd.f32 0.0, %v1177
    %1179 = vmatmul.f32.gmra.mxu0 %v1129
    %v1180 = vpop.f32.mrf.mxu0
    %v1181 = vadd.f32 0.0, %v1180
    %1182 = vmatmul.f32.gmra.mxu0 %v1131
    %v1183 = vpop.f32.mrf.mxu0
    %v1184 = vadd.f32 0.0, %v1183
    %1185 = vmatmul.f32.gmra.mxu0 %v1133
    %v1186 = vpop.f32.mrf.mxu0
    %v1187 = vadd.f32 0.0, %v1186
    %1188 = vmatmul.f32.gmra.mxu0 %v1135
    %v1189 = vpop.f32.mrf.mxu0
    %v1190 = vadd.f32 0.0, %v1189
    %1191 = vmatmul.f32.gmra.mxu0 %v1137
    %v1192 = vpop.f32.mrf.mxu0
    %v1193 = vadd.f32 0.0, %v1192
    %1194 = vmatmul.f32.gmra.mxu0 %v1139
    %v1195 = vpop.f32.mrf.mxu0
    %v1196 = vadd.f32 0.0, %v1195
    %1197 = vdwg.mxu0
    %v1198 = vsel %vm548, %v1070, -inf
    %1199 = vmax.xlane.f32.xlu0 %v1198
    %v1200 = vpop.xlane.xlu0 %1199
    %v1201 = vsel %vm548, %v1073, -inf
    %1202 = vmax.xlane.f32.xlu0 %v1201
    %v1203 = vpop.xlane.xlu0 %1202
    %v1204 = vsel %vm548, %v1076, -inf
    %1205 = vmax.xlane.f32.xlu0 %v1204
    %v1206 = vpop.xlane.xlu0 %1205
    %v1207 = vsel %vm548, %v1079, -inf
    %1208 = vmax.xlane.f32.xlu0 %v1207
    %v1209 = vpop.xlane.xlu0 %1208
    %v1210 = vsel %vm548, %v1082, -inf
    %1211 = vmax.xlane.f32.xlu0 %v1210
    %v1212 = vpop.xlane.xlu0 %1211
    %v1213 = vsel %vm548, %v1085, -inf
    %1214 = vmax.xlane.f32.xlu0 %v1213
    %v1215 = vpop.xlane.xlu0 %1214
    %v1216 = vsel %vm548, %v1088, -inf
    %1217 = vmax.xlane.f32.xlu0 %v1216
    %v1218 = vpop.xlane.xlu0 %1217
    %v1219 = vsel %vm548, %v1091, -inf
    %1220 = vmax.xlane.f32.xlu0 %v1219
    %v1221 = vpop.xlane.xlu0 %1220
    %v1222 = vsel %vm548, %v1175, -inf
    %1223 = vmax.xlane.f32.xlu0 %v1222
    %v1224 = vpop.xlane.xlu0 %1223
    %v1225 = vsel %vm548, %v1178, -inf
    %1226 = vmax.xlane.f32.xlu0 %v1225
    %v1227 = vpop.xlane.xlu0 %1226
    %v1228 = vsel %vm548, %v1181, -inf
    %1229 = vmax.xlane.f32.xlu0 %v1228
    %v1230 = vpop.xlane.xlu0 %1229
    %v1231 = vsel %vm548, %v1184, -inf
    %1232 = vmax.xlane.f32.xlu0 %v1231
    %v1233 = vpop.xlane.xlu0 %1232
    %v1234 = vsel %vm548, %v1187, -inf
    %1235 = vmax.xlane.f32.xlu0 %v1234
    %v1236 = vpop.xlane.xlu0 %1235
    %v1237 = vsel %vm548, %v1190, -inf
    %1238 = vmax.xlane.f32.xlu0 %v1237
    %v1239 = vpop.xlane.xlu0 %1238
    %v1240 = vsel %vm548, %v1193, -inf
    %1241 = vmax.xlane.f32.xlu0 %v1240
    %v1242 = vpop.xlane.xlu0 %1241
    %v1243 = vsel %vm548, %v1196, -inf
    %1244 = vmax.xlane.f32.xlu0 %v1243
    %v1245 = vpop.xlane.xlu0 %1244
    %v1246 = vsub.f32 %v1070, %v1200
    %v1247 = vsub.f32 %v1073, %v1203
    %v1248 = vsub.f32 %v1076, %v1206
    %v1249 = vsub.f32 %v1079, %v1209
    %v1250 = vsub.f32 %v1082, %v1212
    %v1251 = vsub.f32 %v1085, %v1215
    %v1252 = vsub.f32 %v1088, %v1218
    %v1253 = vsub.f32 %v1091, %v1221
    %v1254 = vsub.f32 %v1175, %v1224
    %v1255 = vsub.f32 %v1178, %v1227
    %v1256 = vsub.f32 %v1181, %v1230
    %v1257 = vsub.f32 %v1184, %v1233
    %v1258 = vsub.f32 %v1187, %v1236
    %v1259 = vsub.f32 %v1190, %v1239
    %v1260 = vsub.f32 %v1193, %v1242
    %v1261 = vsub.f32 %v1196, %v1245
    %v1262 = vmul.f32 %v1246, 1.442695
    %v1263 = vpow.pop %v1262
    %v1264 = vmul.f32 %v1247, 1.442695
    %v1265 = vpow.pop %v1264
    %v1266 = vmul.f32 %v1248, 1.442695
    %v1267 = vpow.pop %v1266
    %v1268 = vmul.f32 %v1249, 1.442695
    %v1269 = vpow.pop %v1268
    %v1270 = vmul.f32 %v1250, 1.442695
    %v1271 = vpow.pop %v1270
    %v1272 = vmul.f32 %v1251, 1.442695
    %v1273 = vpow.pop %v1272
    %v1274 = vmul.f32 %v1252, 1.442695
    %v1275 = vpow.pop %v1274
    %v1276 = vmul.f32 %v1253, 1.442695
    %v1277 = vpow.pop %v1276
    %v1278 = vmul.f32 %v1254, 1.442695
    %v1279 = vpow.pop %v1278
    %v1280 = vmul.f32 %v1255, 1.442695
    %v1281 = vpow.pop %v1280
    %v1282 = vmul.f32 %v1256, 1.442695
    %v1283 = vpow.pop %v1282
    %v1284 = vmul.f32 %v1257, 1.442695
    %v1285 = vpow.pop %v1284
    %v1286 = vmul.f32 %v1258, 1.442695
    %v1287 = vpow.pop %v1286
    %v1288 = vmul.f32 %v1259, 1.442695
    %v1289 = vpow.pop %v1288
    %v1290 = vmul.f32 %v1260, 1.442695
    %v1291 = vpow.pop %v1290
    %v1292 = vmul.f32 %v1261, 1.442695
    %v1293 = vpow.pop %v1292
    %v1294 = vsel %vm548, %v1263, 0.0
    %1295 = vadd.xlane.f32.xlu0 %v1294
    %v1296 = vpop.xlane.xlu0 %1295
    %v1297 = vsel %vm548, %v1265, 0.0
    %1298 = vadd.xlane.f32.xlu0 %v1297
    %v1299 = vpop.xlane.xlu0 %1298
    %v1300 = vsel %vm548, %v1267, 0.0
    %1301 = vadd.xlane.f32.xlu0 %v1300
    %v1302 = vpop.xlane.xlu0 %1301
    %v1303 = vsel %vm548, %v1269, 0.0
    %1304 = vadd.xlane.f32.xlu0 %v1303
    %v1305 = vpop.xlane.xlu0 %1304
    %v1306 = vsel %vm548, %v1271, 0.0
    %1307 = vadd.xlane.f32.xlu0 %v1306
    %v1308 = vpop.xlane.xlu0 %1307
    %v1309 = vsel %vm548, %v1273, 0.0
    %1310 = vadd.xlane.f32.xlu0 %v1309
    %v1311 = vpop.xlane.xlu0 %1310
    %v1312 = vsel %vm548, %v1275, 0.0
    %1313 = vadd.xlane.f32.xlu0 %v1312
    %v1314 = vpop.xlane.xlu0 %1313
    %v1315 = vsel %vm548, %v1277, 0.0
    %1316 = vadd.xlane.f32.xlu0 %v1315
    %v1317 = vpop.xlane.xlu0 %1316
    %v1318 = vsel %vm548, %v1279, 0.0
    %1319 = vadd.xlane.f32.xlu0 %v1318
    %v1320 = vpop.xlane.xlu0 %1319
    %v1321 = vsel %vm548, %v1281, 0.0
    %1322 = vadd.xlane.f32.xlu0 %v1321
    %v1323 = vpop.xlane.xlu0 %1322
    %v1324 = vsel %vm548, %v1283, 0.0
    %1325 = vadd.xlane.f32.xlu0 %v1324
    %v1326 = vpop.xlane.xlu0 %1325
    %v1327 = vsel %vm548, %v1285, 0.0
    %1328 = vadd.xlane.f32.xlu0 %v1327
    %v1329 = vpop.xlane.xlu0 %1328
    %v1330 = vsel %vm548, %v1287, 0.0
    %1331 = vadd.xlane.f32.xlu0 %v1330
    %v1332 = vpop.xlane.xlu0 %1331
    %v1333 = vsel %vm548, %v1289, 0.0
    %1334 = vadd.xlane.f32.xlu0 %v1333
    %v1335 = vpop.xlane.xlu0 %1334
    %v1336 = vsel %vm548, %v1291, 0.0
    %1337 = vadd.xlane.f32.xlu0 %v1336
    %v1338 = vpop.xlane.xlu0 %1337
    %v1339 = vsel %vm548, %v1293, 0.0
    %1340 = vadd.xlane.f32.xlu0 %v1339
    %v1341 = vpop.xlane.xlu0 %1340
    %1350 = vrot.lane.b32.xlu0 %v302, 96
    %v1351 = vpop.permute.xlu0 %1350
    %1352 = vrot.lane.b32.xlu0 %v305, 96
    %v1353 = vpop.permute.xlu0 %1352
    %1354 = vrot.lane.b32.xlu0 %v308, 96
    %v1355 = vpop.permute.xlu0 %1354
    %1356 = vrot.lane.b32.xlu0 %v311, 96
    %v1357 = vpop.permute.xlu0 %1356
    %1358 = vrot.lane.b32.xlu0 %v314, 96
    %v1359 = vpop.permute.xlu0 %1358
    %1360 = vrot.lane.b32.xlu0 %v317, 96
    %v1361 = vpop.permute.xlu0 %1360
    %1362 = vrot.lane.b32.xlu0 %v320, 96
    %v1363 = vpop.permute.xlu0 %1362
    %1364 = vrot.lane.b32.xlu0 %v323, 96
    %v1365 = vpop.permute.xlu0 %1364
    %v1375 = vsel %vm548, %v1263, 0
    %v1378 = vsel %vm548, %v1265, 0
    %v1381 = vsel %vm548, %v1267, 0
    %v1384 = vsel %vm548, %v1269, 0
    %v1387 = vsel %vm548, %v1271, 0
    %v1390 = vsel %vm548, %v1273, 0
    %v1393 = vsel %vm548, %v1275, 0
    %v1396 = vsel %vm548, %v1277, 0
    %1398 = vmatpush.msra.mxu0 0.0
    %1399 = vmatpush.msra.mxu0 0.0
    %1400 = vmatpush.msra.mxu0 0.0
    %1401 = vmatpush.msra.mxu0 0.0
    %1402 = vmatpush.msra.mxu0 0.0
    %1403 = vmatpush.msra.mxu0 0.0
    %1404 = vmatpush.msra.mxu0 0.0
    %1405 = vmatpush.msra.mxu0 0.0
    %1406 = vmatpush.msra.mxu0 %v1365
    %1407 = vmatpush.msra.mxu0 %v1363
    %1408 = vmatpush.msra.mxu0 %v1361
    %1409 = vmatpush.msra.mxu0 %v1359
    %1410 = vmatpush.msra.mxu0 %v1357
    %1411 = vmatpush.msra.mxu0 %v1355
    %1412 = vmatpush.msra.mxu0 %v1353
    %1413 = vmatpush.msra.mxu0 %v1351
    %1414 = vmatmul.f32.gmra.mxu0 %v1375
    %v1415 = vpop.f32.mrf.mxu0
    %v1416 = vadd.f32 0.0, %v1415
    %1417 = vmatmul.f32.gmra.mxu0 %v1378
    %v1418 = vpop.f32.mrf.mxu0
    %v1419 = vadd.f32 0.0, %v1418
    %1420 = vmatmul.f32.gmra.mxu0 %v1381
    %v1421 = vpop.f32.mrf.mxu0
    %v1422 = vadd.f32 0.0, %v1421
    %1423 = vmatmul.f32.gmra.mxu0 %v1384
    %v1424 = vpop.f32.mrf.mxu0
    %v1425 = vadd.f32 0.0, %v1424
    %1426 = vmatmul.f32.gmra.mxu0 %v1387
    %v1427 = vpop.f32.mrf.mxu0
    %v1428 = vadd.f32 0.0, %v1427
    %1429 = vmatmul.f32.gmra.mxu0 %v1390
    %v1430 = vpop.f32.mrf.mxu0
    %v1431 = vadd.f32 0.0, %v1430
    %1432 = vmatmul.f32.gmra.mxu0 %v1393
    %v1433 = vpop.f32.mrf.mxu0
    %v1434 = vadd.f32 0.0, %v1433
    %1435 = vmatmul.f32.gmra.mxu0 %v1396
    %v1436 = vpop.f32.mrf.mxu0
    %v1437 = vadd.f32 0.0, %v1436
    %1438 = vdwg.mxu0
    %1447 = vrot.lane.b32.xlu0 %v326, 96
    %v1448 = vpop.permute.xlu0 %1447
    %1449 = vrot.lane.b32.xlu0 %v329, 96
    %v1450 = vpop.permute.xlu0 %1449
    %1451 = vrot.lane.b32.xlu0 %v332, 96
    %v1452 = vpop.permute.xlu0 %1451
    %1453 = vrot.lane.b32.xlu0 %v335, 96
    %v1454 = vpop.permute.xlu0 %1453
    %1455 = vrot.lane.b32.xlu0 %v338, 96
    %v1456 = vpop.permute.xlu0 %1455
    %1457 = vrot.lane.b32.xlu0 %v341, 96
    %v1458 = vpop.permute.xlu0 %1457
    %1459 = vrot.lane.b32.xlu0 %v344, 96
    %v1460 = vpop.permute.xlu0 %1459
    %1461 = vrot.lane.b32.xlu0 %v347, 96
    %v1462 = vpop.permute.xlu0 %1461
    %v1472 = vsel %vm548, %v1279, 0
    %v1475 = vsel %vm548, %v1281, 0
    %v1478 = vsel %vm548, %v1283, 0
    %v1481 = vsel %vm548, %v1285, 0
    %v1484 = vsel %vm548, %v1287, 0
    %v1487 = vsel %vm548, %v1289, 0
    %v1490 = vsel %vm548, %v1291, 0
    %v1493 = vsel %vm548, %v1293, 0
    %1495 = vmatpush.msra.mxu0 0.0
    %1496 = vmatpush.msra.mxu0 0.0
    %1497 = vmatpush.msra.mxu0 0.0
    %1498 = vmatpush.msra.mxu0 0.0
    %1499 = vmatpush.msra.mxu0 0.0
    %1500 = vmatpush.msra.mxu0 0.0
    %1501 = vmatpush.msra.mxu0 0.0
    %1502 = vmatpush.msra.mxu0 0.0
    %1503 = vmatpush.msra.mxu0 %v1462
    %1504 = vmatpush.msra.mxu0 %v1460
    %1505 = vmatpush.msra.mxu0 %v1458
    %1506 = vmatpush.msra.mxu0 %v1456
    %1507 = vmatpush.msra.mxu0 %v1454
    %1508 = vmatpush.msra.mxu0 %v1452
    %1509 = vmatpush.msra.mxu0 %v1450
    %1510 = vmatpush.msra.mxu0 %v1448
    %1511 = vmatmul.f32.gmra.mxu0 %v1472
    %v1512 = vpop.f32.mrf.mxu0
    %v1513 = vadd.f32 0.0, %v1512
    %1514 = vmatmul.f32.gmra.mxu0 %v1475
    %v1515 = vpop.f32.mrf.mxu0
    %v1516 = vadd.f32 0.0, %v1515
    %1517 = vmatmul.f32.gmra.mxu0 %v1478
    %v1518 = vpop.f32.mrf.mxu0
    %v1519 = vadd.f32 0.0, %v1518
    %1520 = vmatmul.f32.gmra.mxu0 %v1481
    %v1521 = vpop.f32.mrf.mxu0
    %v1522 = vadd.f32 0.0, %v1521
    %1523 = vmatmul.f32.gmra.mxu0 %v1484
    %v1524 = vpop.f32.mrf.mxu0
    %v1525 = vadd.f32 0.0, %v1524
    %1526 = vmatmul.f32.gmra.mxu0 %v1487
    %v1527 = vpop.f32.mrf.mxu0
    %v1528 = vadd.f32 0.0, %v1527
    %1529 = vmatmul.f32.gmra.mxu0 %v1490
    %v1530 = vpop.f32.mrf.mxu0
    %v1531 = vadd.f32 0.0, %v1530
    %1532 = vmatmul.f32.gmra.mxu0 %v1493
    %v1533 = vpop.f32.mrf.mxu0
    %v1534 = vadd.f32 0.0, %v1533
    %1535 = vdwg.mxu0
    %v1536 = vrcp.pop %v1296
    %v1537 = vrcp.pop %v1299
    %v1538 = vrcp.pop %v1302
    %v1539 = vrcp.pop %v1305
    %v1540 = vrcp.pop %v1308
    %v1541 = vrcp.pop %v1311
    %v1542 = vrcp.pop %v1314
    %v1543 = vrcp.pop %v1317
    %v1544 = vrcp.pop %v1320
    %v1545 = vrcp.pop %v1323
    %v1546 = vrcp.pop %v1326
    %v1547 = vrcp.pop %v1329
    %v1548 = vrcp.pop %v1332
    %v1549 = vrcp.pop %v1335
    %v1550 = vrcp.pop %v1338
    %v1551 = vrcp.pop %v1341
    %v1552 = vmul.f32 %v1416, %v1536
    %v1553 = vmul.f32 %v1419, %v1537
    %v1554 = vmul.f32 %v1422, %v1538
    %v1555 = vmul.f32 %v1425, %v1539
    %v1556 = vmul.f32 %v1428, %v1540
    %v1557 = vmul.f32 %v1431, %v1541
    %v1558 = vmul.f32 %v1434, %v1542
    %v1559 = vmul.f32 %v1437, %v1543
    %v1560 = vmul.f32 %v1513, %v1544
    %v1561 = vmul.f32 %v1516, %v1545
    %v1562 = vmul.f32 %v1519, %v1546
    %v1563 = vmul.f32 %v1522, %v1547
    %v1564 = vmul.f32 %v1525, %v1548
    %v1565 = vmul.f32 %v1528, %v1549
    %v1566 = vmul.f32 %v1531, %v1550
    %v1567 = vmul.f32 %v1534, %v1551
    %v1568 = vld [vmem:[#allocation8 + $0x20] sm:$0xff]
    %v1569 = vld [vmem:[#allocation8 + $0x28] sm:$0xff]
    %v1570 = vld [vmem:[#allocation8 + $0x30] sm:$0xff]
    %v1571 = vld [vmem:[#allocation8 + $0x38] sm:$0xff]
    %v1573 = vsel %vm369, %v1552, 0
    %v1576 = vsel %vm369, %v1553, 0
    %v1579 = vsel %vm369, %v1554, 0
    %v1582 = vsel %vm369, %v1555, 0
    %v1585 = vsel %vm369, %v1556, 0
    %v1588 = vsel %vm369, %v1557, 0
    %v1591 = vsel %vm369, %v1558, 0
    %v1594 = vsel %vm369, %v1559, 0
    %v1597 = vsel %vm369, %v1560, 0
    %v1600 = vsel %vm369, %v1561, 0
    %v1603 = vsel %vm369, %v1562, 0
    %v1606 = vsel %vm369, %v1563, 0
    %v1609 = vsel %vm369, %v1564, 0
    %v1612 = vsel %vm369, %v1565, 0
    %v1615 = vsel %vm369, %v1566, 0
    %v1618 = vsel %vm369, %v1567, 0
    %1620 = vmatpush.msra.mxu0 0.0
    %1621 = vmatpush.msra.mxu0 0.0
    %1622 = vmatpush.msra.mxu0 0.0
    %1623 = vmatpush.msra.mxu0 0.0
    %1624 = vmatpush.msra.mxu0 0.0
    %1625 = vmatpush.msra.mxu0 0.0
    %1626 = vmatpush.msra.mxu0 0.0
    %1627 = vmatpush.msra.mxu0 0.0
    %1628 = vmatpush.msra.mxu0 0.0
    %1629 = vmatpush.msra.mxu0 0.0
    %1630 = vmatpush.msra.mxu0 0.0
    %1631 = vmatpush.msra.mxu0 0.0
    %1632 = vmatpush.msra.mxu0 %v1571
    %1633 = vmatpush.msra.mxu0 %v1570
    %1634 = vmatpush.msra.mxu0 %v1569
    %1635 = vmatpush.msra.mxu0 %v1568
    %1636 = vmatmul.f32.gmra.mxu0 %v1573
    %v1637 = vpop.f32.mrf.mxu0
    %v1638 = vadd.f32 0.0, %v1637
    %1639 = vmatmul.f32.gmra.mxu0 %v1576
    %v1640 = vpop.f32.mrf.mxu0
    %v1641 = vadd.f32 0.0, %v1640
    %1642 = vmatmul.f32.gmra.mxu0 %v1579
    %v1643 = vpop.f32.mrf.mxu0
    %v1644 = vadd.f32 0.0, %v1643
    %1645 = vmatmul.f32.gmra.mxu0 %v1582
    %v1646 = vpop.f32.mrf.mxu0
    %v1647 = vadd.f32 0.0, %v1646
    %1648 = vmatmul.f32.gmra.mxu0 %v1585
    %v1649 = vpop.f32.mrf.mxu0
    %v1650 = vadd.f32 0.0, %v1649
    %1651 = vmatmul.f32.gmra.mxu0 %v1588
    %v1652 = vpop.f32.mrf.mxu0
    %v1653 = vadd.f32 0.0, %v1652
    %1654 = vmatmul.f32.gmra.mxu0 %v1591
    %v1655 = vpop.f32.mrf.mxu0
    %v1656 = vadd.f32 0.0, %v1655
    %1657 = vmatmul.f32.gmra.mxu0 %v1594
    %v1658 = vpop.f32.mrf.mxu0
    %v1659 = vadd.f32 0.0, %v1658
    %1660 = vmatmul.f32.gmra.mxu0 %v1597
    %v1661 = vpop.f32.mrf.mxu0
    %v1662 = vadd.f32 0.0, %v1661
    %1663 = vmatmul.f32.gmra.mxu0 %v1600
    %v1664 = vpop.f32.mrf.mxu0
    %v1665 = vadd.f32 0.0, %v1664
    %1666 = vmatmul.f32.gmra.mxu0 %v1603
    %v1667 = vpop.f32.mrf.mxu0
    %v1668 = vadd.f32 0.0, %v1667
    %1669 = vmatmul.f32.gmra.mxu0 %v1606
    %v1670 = vpop.f32.mrf.mxu0
    %v1671 = vadd.f32 0.0, %v1670
    %1672 = vmatmul.f32.gmra.mxu0 %v1609
    %v1673 = vpop.f32.mrf.mxu0
    %v1674 = vadd.f32 0.0, %v1673
    %1675 = vmatmul.f32.gmra.mxu0 %v1612
    %v1676 = vpop.f32.mrf.mxu0
    %v1677 = vadd.f32 0.0, %v1676
    %1678 = vmatmul.f32.gmra.mxu0 %v1615
    %v1679 = vpop.f32.mrf.mxu0
    %v1680 = vadd.f32 0.0, %v1679
    %1681 = vmatmul.f32.gmra.mxu0 %v1618
    %v1682 = vpop.f32.mrf.mxu0
    %v1683 = vadd.f32 0.0, %v1682
    %1684 = vdwg.mxu0
    %v1685 = vadd.f32 %v972, %v1638
    %v1686 = vadd.f32 %v973, %v1641
    %v1687 = vadd.f32 %v974, %v1644
    %v1688 = vadd.f32 %v975, %v1647
    %v1689 = vadd.f32 %v976, %v1650
    %v1690 = vadd.f32 %v977, %v1653
    %v1691 = vadd.f32 %v978, %v1656
    %v1692 = vadd.f32 %v979, %v1659
    %v1693 = vadd.f32 %v980, %v1662
    %v1694 = vadd.f32 %v981, %v1665
    %v1695 = vadd.f32 %v982, %v1668
    %v1696 = vadd.f32 %v983, %v1671
    %v1697 = vadd.f32 %v984, %v1674
    %v1698 = vadd.f32 %v985, %v1677
    %v1699 = vadd.f32 %v986, %v1680
    %v1700 = vadd.f32 %v987, %v1683
    %1701 = vrot.lane.b32.xlu0 %v172, 64
    %v1702 = vpop.permute.xlu0 %1701
    %1703 = vrot.lane.b32.xlu0 %v175, 64
    %v1704 = vpop.permute.xlu0 %1703
    %1705 = vrot.lane.b32.xlu0 %v178, 64
    %v1706 = vpop.permute.xlu0 %1705
    %1707 = vrot.lane.b32.xlu0 %v181, 64
    %v1708 = vpop.permute.xlu0 %1707
    %1709 = vrot.lane.b32.xlu0 %v184, 64
    %v1710 = vpop.permute.xlu0 %1709
    %1711 = vrot.lane.b32.xlu0 %v187, 64
    %v1712 = vpop.permute.xlu0 %1711
    %1713 = vrot.lane.b32.xlu0 %v190, 64
    %v1714 = vpop.permute.xlu0 %1713
    %1715 = vrot.lane.b32.xlu0 %v193, 64
    %v1716 = vpop.permute.xlu0 %1715
    %1717 = vrot.lane.b32.xlu0 %v237, 64
    %v1718 = vpop.permute.xlu0 %1717
    %1719 = vrot.lane.b32.xlu0 %v240, 64
    %v1720 = vpop.permute.xlu0 %1719
    %1721 = vrot.lane.b32.xlu0 %v243, 64
    %v1722 = vpop.permute.xlu0 %1721
    %1723 = vrot.lane.b32.xlu0 %v246, 64
    %v1724 = vpop.permute.xlu0 %1723
    %1725 = vrot.lane.b32.xlu0 %v249, 64
    %v1726 = vpop.permute.xlu0 %1725
    %1727 = vrot.lane.b32.xlu0 %v252, 64
    %v1728 = vpop.permute.xlu0 %1727
    %1729 = vrot.lane.b32.xlu0 %v255, 64
    %v1730 = vpop.permute.xlu0 %1729
    %1731 = vrot.lane.b32.xlu0 %v258, 64
    %v1732 = vpop.permute.xlu0 %1731
    %v1733 = vsel %vm369, %v1702, 0
    %v1735 = vsel %vm369, %v1704, 0
    %v1737 = vsel %vm369, %v1706, 0
    %v1739 = vsel %vm369, %v1708, 0
    %v1741 = vsel %vm369, %v1710, 0
    %v1743 = vsel %vm369, %v1712, 0
    %v1745 = vsel %vm369, %v1714, 0
    %v1747 = vsel %vm369, %v1716, 0
    %v1749 = vsel %vm369, %v1718, 0
    %v1751 = vsel %vm369, %v1720, 0
    %v1753 = vsel %vm369, %v1722, 0
    %v1755 = vsel %vm369, %v1724, 0
    %v1757 = vsel %vm369, %v1726, 0
    %v1759 = vsel %vm369, %v1728, 0
    %v1761 = vsel %vm369, %v1730, 0
    %v1763 = vsel %vm369, %v1732, 0
    %1765 = vmatpush.xpose.msra.mxu0 0.0
    %1766 = vmatpush.xpose.msra.mxu0 0.0
    %1767 = vmatpush.xpose.msra.mxu0 0.0
    %1768 = vmatpush.xpose.msra.mxu0 0.0
    %1769 = vmatpush.xpose.msra.mxu0 0.0
    %1770 = vmatpush.xpose.msra.mxu0 0.0
    %1771 = vmatpush.xpose.msra.mxu0 0.0
    %1772 = vmatpush.xpose.msra.mxu0 0.0
    %1773 = vmatpush.xpose.msra.mxu0 %v1763
    %1774 = vmatpush.xpose.msra.mxu0 %v1761
    %1775 = vmatpush.xpose.msra.mxu0 %v1759
    %1776 = vmatpush.xpose.msra.mxu0 %v1757
    %1777 = vmatpush.xpose.msra.mxu0 %v1755
    %1778 = vmatpush.xpose.msra.mxu0 %v1753
    %1779 = vmatpush.xpose.msra.mxu0 %v1751
    %1780 = vmatpush.xpose.msra.mxu0 %v1749
    %1781 = vmatmul.f32.gmra.mxu0 %v1733
    %v1782 = vpop.f32.mrf.mxu0
    %v1783 = vadd.f32 0.0, %v1782
    %1784 = vmatmul.f32.gmra.mxu0 %v1735
    %v1785 = vpop.f32.mrf.mxu0
    %v1786 = vadd.f32 0.0, %v1785
    %1787 = vmatmul.f32.gmra.mxu0 %v1737
    %v1788 = vpop.f32.mrf.mxu0
    %v1789 = vadd.f32 0.0, %v1788
    %1790 = vmatmul.f32.gmra.mxu0 %v1739
    %v1791 = vpop.f32.mrf.mxu0
    %v1792 = vadd.f32 0.0, %v1791
    %1793 = vmatmul.f32.gmra.mxu0 %v1741
    %v1794 = vpop.f32.mrf.mxu0
    %v1795 = vadd.f32 0.0, %v1794
    %1796 = vmatmul.f32.gmra.mxu0 %v1743
    %v1797 = vpop.f32.mrf.mxu0
    %v1798 = vadd.f32 0.0, %v1797
    %1799 = vmatmul.f32.gmra.mxu0 %v1745
    %v1800 = vpop.f32.mrf.mxu0
    %v1801 = vadd.f32 0.0, %v1800
    %1802 = vmatmul.f32.gmra.mxu0 %v1747
    %v1803 = vpop.f32.mrf.mxu0
    %v1804 = vadd.f32 0.0, %v1803
    %1805 = vdwg.mxu0
    %1806 = vrot.lane.b32.xlu0 %v196, 64
    %v1807 = vpop.permute.xlu0 %1806
    %1808 = vrot.lane.b32.xlu0 %v199, 64
    %v1809 = vpop.permute.xlu0 %1808
    %1810 = vrot.lane.b32.xlu0 %v202, 64
    %v1811 = vpop.permute.xlu0 %1810
    %1812 = vrot.lane.b32.xlu0 %v205, 64
    %v1813 = vpop.permute.xlu0 %1812
    %1814 = vrot.lane.b32.xlu0 %v208, 64
    %v1815 = vpop.permute.xlu0 %1814
    %1816 = vrot.lane.b32.xlu0 %v211, 64
    %v1817 = vpop.permute.xlu0 %1816
    %1818 = vrot.lane.b32.xlu0 %v214, 64
    %v1819 = vpop.permute.xlu0 %1818
    %1820 = vrot.lane.b32.xlu0 %v217, 64
    %v1821 = vpop.permute.xlu0 %1820
    %1822 = vrot.lane.b32.xlu0 %v261, 64
    %v1823 = vpop.permute.xlu0 %1822
    %1824 = vrot.lane.b32.xlu0 %v264, 64
    %v1825 = vpop.permute.xlu0 %1824
    %1826 = vrot.lane.b32.xlu0 %v267, 64
    %v1827 = vpop.permute.xlu0 %1826
    %1828 = vrot.lane.b32.xlu0 %v270, 64
    %v1829 = vpop.permute.xlu0 %1828
    %1830 = vrot.lane.b32.xlu0 %v273, 64
    %v1831 = vpop.permute.xlu0 %1830
    %1832 = vrot.lane.b32.xlu0 %v276, 64
    %v1833 = vpop.permute.xlu0 %1832
    %1834 = vrot.lane.b32.xlu0 %v279, 64
    %v1835 = vpop.permute.xlu0 %1834
    %1836 = vrot.lane.b32.xlu0 %v282, 64
    %v1837 = vpop.permute.xlu0 %1836
    %v1838 = vsel %vm369, %v1807, 0
    %v1840 = vsel %vm369, %v1809, 0
    %v1842 = vsel %vm369, %v1811, 0
    %v1844 = vsel %vm369, %v1813, 0
    %v1846 = vsel %vm369, %v1815, 0
    %v1848 = vsel %vm369, %v1817, 0
    %v1850 = vsel %vm369, %v1819, 0
    %v1852 = vsel %vm369, %v1821, 0
    %v1854 = vsel %vm369, %v1823, 0
    %v1856 = vsel %vm369, %v1825, 0
    %v1858 = vsel %vm369, %v1827, 0
    %v1860 = vsel %vm369, %v1829, 0
    %v1862 = vsel %vm369, %v1831, 0
    %v1864 = vsel %vm369, %v1833, 0
    %v1866 = vsel %vm369, %v1835, 0
    %v1868 = vsel %vm369, %v1837, 0
    %1870 = vmatpush.xpose.msra.mxu0 0.0
    %1871 = vmatpush.xpose.msra.mxu0 0.0
    %1872 = vmatpush.xpose.msra.mxu0 0.0
    %1873 = vmatpush.xpose.msra.mxu0 0.0
    %1874 = vmatpush.xpose.msra.mxu0 0.0
    %1875 = vmatpush.xpose.msra.mxu0 0.0
    %1876 = vmatpush.xpose.msra.mxu0 0.0
    %1877 = vmatpush.xpose.msra.mxu0 0.0
    %1878 = vmatpush.xpose.msra.mxu0 %v1868
    %1879 = vmatpush.xpose.msra.mxu0 %v1866
    %1880 = vmatpush.xpose.msra.mxu0 %v1864
    %1881 = vmatpush.xpose.msra.mxu0 %v1862
    %1882 = vmatpush.xpose.msra.mxu0 %v1860
    %1883 = vmatpush.xpose.msra.mxu0 %v1858
    %1884 = vmatpush.xpose.msra.mxu0 %v1856
    %1885 = vmatpush.xpose.msra.mxu0 %v1854
    %1886 = vmatmul.f32.gmra.mxu0 %v1838
    %v1887 = vpop.f32.mrf.mxu0
    %v1888 = vadd.f32 0.0, %v1887
    %1889 = vmatmul.f32.gmra.mxu0 %v1840
    %v1890 = vpop.f32.mrf.mxu0
    %v1891 = vadd.f32 0.0, %v1890
    %1892 = vmatmul.f32.gmra.mxu0 %v1842
    %v1893 = vpop.f32.mrf.mxu0
    %v1894 = vadd.f32 0.0, %v1893
    %1895 = vmatmul.f32.gmra.mxu0 %v1844
    %v1896 = vpop.f32.mrf.mxu0
    %v1897 = vadd.f32 0.0, %v1896
    %1898 = vmatmul.f32.gmra.mxu0 %v1846
    %v1899 = vpop.f32.mrf.mxu0
    %v1900 = vadd.f32 0.0, %v1899
    %1901 = vmatmul.f32.gmra.mxu0 %v1848
    %v1902 = vpop.f32.mrf.mxu0
    %v1903 = vadd.f32 0.0, %v1902
    %1904 = vmatmul.f32.gmra.mxu0 %v1850
    %v1905 = vpop.f32.mrf.mxu0
    %v1906 = vadd.f32 0.0, %v1905
    %1907 = vmatmul.f32.gmra.mxu0 %v1852
    %v1908 = vpop.f32.mrf.mxu0
    %v1909 = vadd.f32 0.0, %v1908
    %1910 = vdwg.mxu0
    %v1911 = vsel %vm548, %v1783, -inf
    %1912 = vmax.xlane.f32.xlu0 %v1911
    %v1913 = vpop.xlane.xlu0 %1912
    %v1914 = vsel %vm548, %v1786, -inf
    %1915 = vmax.xlane.f32.xlu0 %v1914
    %v1916 = vpop.xlane.xlu0 %1915
    %v1917 = vsel %vm548, %v1789, -inf
    %1918 = vmax.xlane.f32.xlu0 %v1917
    %v1919 = vpop.xlane.xlu0 %1918
    %v1920 = vsel %vm548, %v1792, -inf
    %1921 = vmax.xlane.f32.xlu0 %v1920
    %v1922 = vpop.xlane.xlu0 %1921
    %v1923 = vsel %vm548, %v1795, -inf
    %1924 = vmax.xlane.f32.xlu0 %v1923
    %v1925 = vpop.xlane.xlu0 %1924
    %v1926 = vsel %vm548, %v1798, -inf
    %1927 = vmax.xlane.f32.xlu0 %v1926
    %v1928 = vpop.xlane.xlu0 %1927
    %v1929 = vsel %vm548, %v1801, -inf
    %1930 = vmax.xlane.f32.xlu0 %v1929
    %v1931 = vpop.xlane.xlu0 %1930
    %v1932 = vsel %vm548, %v1804, -inf
    %1933 = vmax.xlane.f32.xlu0 %v1932
    %v1934 = vpop.xlane.xlu0 %1933
    %v1935 = vsel %vm548, %v1888, -inf
    %1936 = vmax.xlane.f32.xlu0 %v1935
    %v1937 = vpop.xlane.xlu0 %1936
    %v1938 = vsel %vm548, %v1891, -inf
    %1939 = vmax.xlane.f32.xlu0 %v1938
    %v1940 = vpop.xlane.xlu0 %1939
    %v1941 = vsel %vm548, %v1894, -inf
    %1942 = vmax.xlane.f32.xlu0 %v1941
    %v1943 = vpop.xlane.xlu0 %1942
    %v1944 = vsel %vm548, %v1897, -inf
    %1945 = vmax.xlane.f32.xlu0 %v1944
    %v1946 = vpop.xlane.xlu0 %1945
    %v1947 = vsel %vm548, %v1900, -inf
    %1948 = vmax.xlane.f32.xlu0 %v1947
    %v1949 = vpop.xlane.xlu0 %1948
    %v1950 = vsel %vm548, %v1903, -inf
    %1951 = vmax.xlane.f32.xlu0 %v1950
    %v1952 = vpop.xlane.xlu0 %1951
    %v1953 = vsel %vm548, %v1906, -inf
    %1954 = vmax.xlane.f32.xlu0 %v1953
    %v1955 = vpop.xlane.xlu0 %1954
    %v1956 = vsel %vm548, %v1909, -inf
    %1957 = vmax.xlane.f32.xlu0 %v1956
    %v1958 = vpop.xlane.xlu0 %1957
    %v1959 = vsub.f32 %v1783, %v1913
    %v1960 = vsub.f32 %v1786, %v1916
    %v1961 = vsub.f32 %v1789, %v1919
    %v1962 = vsub.f32 %v1792, %v1922
    %v1963 = vsub.f32 %v1795, %v1925
    %v1964 = vsub.f32 %v1798, %v1928
    %v1965 = vsub.f32 %v1801, %v1931
    %v1966 = vsub.f32 %v1804, %v1934
    %v1967 = vsub.f32 %v1888, %v1937
    %v1968 = vsub.f32 %v1891, %v1940
    %v1969 = vsub.f32 %v1894, %v1943
    %v1970 = vsub.f32 %v1897, %v1946
    %v1971 = vsub.f32 %v1900, %v1949
    %v1972 = vsub.f32 %v1903, %v1952
    %v1973 = vsub.f32 %v1906, %v1955
    %v1974 = vsub.f32 %v1909, %v1958
    %v1975 = vmul.f32 %v1959, 1.442695
    %v1976 = vpow.pop %v1975
    %v1977 = vmul.f32 %v1960, 1.442695
    %v1978 = vpow.pop %v1977
    %v1979 = vmul.f32 %v1961, 1.442695
    %v1980 = vpow.pop %v1979
    %v1981 = vmul.f32 %v1962, 1.442695
    %v1982 = vpow.pop %v1981
    %v1983 = vmul.f32 %v1963, 1.442695
    %v1984 = vpow.pop %v1983
    %v1985 = vmul.f32 %v1964, 1.442695
    %v1986 = vpow.pop %v1985
    %v1987 = vmul.f32 %v1965, 1.442695
    %v1988 = vpow.pop %v1987
    %v1989 = vmul.f32 %v1966, 1.442695
    %v1990 = vpow.pop %v1989
    %v1991 = vmul.f32 %v1967, 1.442695
    %v1992 = vpow.pop %v1991
    %v1993 = vmul.f32 %v1968, 1.442695
    %v1994 = vpow.pop %v1993
    %v1995 = vmul.f32 %v1969, 1.442695
    %v1996 = vpow.pop %v1995
    %v1997 = vmul.f32 %v1970, 1.442695
    %v1998 = vpow.pop %v1997
    %v1999 = vmul.f32 %v1971, 1.442695
    %v2000 = vpow.pop %v1999
    %v2001 = vmul.f32 %v1972, 1.442695
    %v2002 = vpow.pop %v2001
    %v2003 = vmul.f32 %v1973, 1.442695
    %v2004 = vpow.pop %v2003
    %v2005 = vmul.f32 %v1974, 1.442695
    %v2006 = vpow.pop %v2005
    %v2007 = vsel %vm548, %v1976, 0.0
    %2008 = vadd.xlane.f32.xlu0 %v2007
    %v2009 = vpop.xlane.xlu0 %2008
    %v2010 = vsel %vm548, %v1978, 0.0
    %2011 = vadd.xlane.f32.xlu0 %v2010
    %v2012 = vpop.xlane.xlu0 %2011
    %v2013 = vsel %vm548, %v1980, 0.0
    %2014 = vadd.xlane.f32.xlu0 %v2013
    %v2015 = vpop.xlane.xlu0 %2014
    %v2016 = vsel %vm548, %v1982, 0.0
    %2017 = vadd.xlane.f32.xlu0 %v2016
    %v2018 = vpop.xlane.xlu0 %2017
    %v2019 = vsel %vm548, %v1984, 0.0
    %2020 = vadd.xlane.f32.xlu0 %v2019
    %v2021 = vpop.xlane.xlu0 %2020
    %v2022 = vsel %vm548, %v1986, 0.0
    %2023 = vadd.xlane.f32.xlu0 %v2022
    %v2024 = vpop.xlane.xlu0 %2023
    %v2025 = vsel %vm548, %v1988, 0.0
    %2026 = vadd.xlane.f32.xlu0 %v2025
    %v2027 = vpop.xlane.xlu0 %2026
    %v2028 = vsel %vm548, %v1990, 0.0
    %2029 = vadd.xlane.f32.xlu0 %v2028
    %v2030 = vpop.xlane.xlu0 %2029
    %v2031 = vsel %vm548, %v1992, 0.0
    %2032 = vadd.xlane.f32.xlu0 %v2031
    %v2033 = vpop.xlane.xlu0 %2032
    %v2034 = vsel %vm548, %v1994, 0.0
    %2035 = vadd.xlane.f32.xlu0 %v2034
    %v2036 = vpop.xlane.xlu0 %2035
    %v2037 = vsel %vm548, %v1996, 0.0
    %2038 = vadd.xlane.f32.xlu0 %v2037
    %v2039 = vpop.xlane.xlu0 %2038
    %v2040 = vsel %vm548, %v1998, 0.0
    %2041 = vadd.xlane.f32.xlu0 %v2040
    %v2042 = vpop.xlane.xlu0 %2041
    %v2043 = vsel %vm548, %v2000, 0.0
    %2044 = vadd.xlane.f32.xlu0 %v2043
    %v2045 = vpop.xlane.xlu0 %2044
    %v2046 = vsel %vm548, %v2002, 0.0
    %2047 = vadd.xlane.f32.xlu0 %v2046
    %v2048 = vpop.xlane.xlu0 %2047
    %v2049 = vsel %vm548, %v2004, 0.0
    %2050 = vadd.xlane.f32.xlu0 %v2049
    %v2051 = vpop.xlane.xlu0 %2050
    %v2052 = vsel %vm548, %v2006, 0.0
    %2053 = vadd.xlane.f32.xlu0 %v2052
    %v2054 = vpop.xlane.xlu0 %2053
    %2055 = vrot.lane.b32.xlu0 %v302, 64
    %v2056 = vpop.permute.xlu0 %2055
    %2057 = vrot.lane.b32.xlu0 %v305, 64
    %v2058 = vpop.permute.xlu0 %2057
    %2059 = vrot.lane.b32.xlu0 %v308, 64
    %v2060 = vpop.permute.xlu0 %2059
    %2061 = vrot.lane.b32.xlu0 %v311, 64
    %v2062 = vpop.permute.xlu0 %2061
    %2063 = vrot.lane.b32.xlu0 %v314, 64
    %v2064 = vpop.permute.xlu0 %2063
    %2065 = vrot.lane.b32.xlu0 %v317, 64
    %v2066 = vpop.permute.xlu0 %2065
    %2067 = vrot.lane.b32.xlu0 %v320, 64
    %v2068 = vpop.permute.xlu0 %2067
    %2069 = vrot.lane.b32.xlu0 %v323, 64
    %v2070 = vpop.permute.xlu0 %2069
    %v2080 = vsel %vm548, %v1976, 0
    %v2083 = vsel %vm548, %v1978, 0
    %v2086 = vsel %vm548, %v1980, 0
    %v2089 = vsel %vm548, %v1982, 0
    %v2092 = vsel %vm548, %v1984, 0
    %v2095 = vsel %vm548, %v1986, 0
    %v2098 = vsel %vm548, %v1988, 0
    %v2101 = vsel %vm548, %v1990, 0
    %2103 = vmatpush.msra.mxu0 0.0
    %2104 = vmatpush.msra.mxu0 0.0
    %2105 = vmatpush.msra.mxu0 0.0
    %2106 = vmatpush.msra.mxu0 0.0
    %2107 = vmatpush.msra.mxu0 0.0
    %2108 = vmatpush.msra.mxu0 0.0
    %2109 = vmatpush.msra.mxu0 0.0
    %2110 = vmatpush.msra.mxu0 0.0
    %2111 = vmatpush.msra.mxu0 %v2070
    %2112 = vmatpush.msra.mxu0 %v2068
    %2113 = vmatpush.msra.mxu0 %v2066
    %2114 = vmatpush.msra.mxu0 %v2064
    %2115 = vmatpush.msra.mxu0 %v2062
    %2116 = vmatpush.msra.mxu0 %v2060
    %2117 = vmatpush.msra.mxu0 %v2058
    %2118 = vmatpush.msra.mxu0 %v2056
    %2119 = vmatmul.f32.gmra.mxu0 %v2080
    %v2120 = vpop.f32.mrf.mxu0
    %v2121 = vadd.f32 0.0, %v2120
    %2122 = vmatmul.f32.gmra.mxu0 %v2083
    %v2123 = vpop.f32.mrf.mxu0
    %v2124 = vadd.f32 0.0, %v2123
    %2125 = vmatmul.f32.gmra.mxu0 %v2086
    %v2126 = vpop.f32.mrf.mxu0
    %v2127 = vadd.f32 0.0, %v2126
    %2128 = vmatmul.f32.gmra.mxu0 %v2089
    %v2129 = vpop.f32.mrf.mxu0
    %v2130 = vadd.f32 0.0, %v2129
    %2131 = vmatmul.f32.gmra.mxu0 %v2092
    %v2132 = vpop.f32.mrf.mxu0
    %v2133 = vadd.f32 0.0, %v2132
    %2134 = vmatmul.f32.gmra.mxu0 %v2095
    %v2135 = vpop.f32.mrf.mxu0
    %v2136 = vadd.f32 0.0, %v2135
    %2137 = vmatmul.f32.gmra.mxu0 %v2098
    %v2138 = vpop.f32.mrf.mxu0
    %v2139 = vadd.f32 0.0, %v2138
    %2140 = vmatmul.f32.gmra.mxu0 %v2101
    %v2141 = vpop.f32.mrf.mxu0
    %v2142 = vadd.f32 0.0, %v2141
    %2143 = vdwg.mxu0
    %2144 = vrot.lane.b32.xlu0 %v326, 64
    %v2145 = vpop.permute.xlu0 %2144
    %2146 = vrot.lane.b32.xlu0 %v329, 64
    %v2147 = vpop.permute.xlu0 %2146
    %2148 = vrot.lane.b32.xlu0 %v332, 64
    %v2149 = vpop.permute.xlu0 %2148
    %2150 = vrot.lane.b32.xlu0 %v335, 64
    %v2151 = vpop.permute.xlu0 %2150
    %2152 = vrot.lane.b32.xlu0 %v338, 64
    %v2153 = vpop.permute.xlu0 %2152
    %2154 = vrot.lane.b32.xlu0 %v341, 64
    %v2155 = vpop.permute.xlu0 %2154
    %2156 = vrot.lane.b32.xlu0 %v344, 64
    %v2157 = vpop.permute.xlu0 %2156
    %2158 = vrot.lane.b32.xlu0 %v347, 64
    %v2159 = vpop.permute.xlu0 %2158
    %v2169 = vsel %vm548, %v1992, 0
    %v2172 = vsel %vm548, %v1994, 0
    %v2175 = vsel %vm548, %v1996, 0
    %v2178 = vsel %vm548, %v1998, 0
    %v2181 = vsel %vm548, %v2000, 0
    %v2184 = vsel %vm548, %v2002, 0
    %v2187 = vsel %vm548, %v2004, 0
    %v2190 = vsel %vm548, %v2006, 0
    %2192 = vmatpush.msra.mxu0 0.0
    %2193 = vmatpush.msra.mxu0 0.0
    %2194 = vmatpush.msra.mxu0 0.0
    %2195 = vmatpush.msra.mxu0 0.0
    %2196 = vmatpush.msra.mxu0 0.0
    %2197 = vmatpush.msra.mxu0 0.0
    %2198 = vmatpush.msra.mxu0 0.0
    %2199 = vmatpush.msra.mxu0 0.0
    %2200 = vmatpush.msra.mxu0 %v2159
    %2201 = vmatpush.msra.mxu0 %v2157
    %2202 = vmatpush.msra.mxu0 %v2155
    %2203 = vmatpush.msra.mxu0 %v2153
    %2204 = vmatpush.msra.mxu0 %v2151
    %2205 = vmatpush.msra.mxu0 %v2149
    %2206 = vmatpush.msra.mxu0 %v2147
    %2207 = vmatpush.msra.mxu0 %v2145
    %2208 = vmatmul.f32.gmra.mxu0 %v2169
    %v2209 = vpop.f32.mrf.mxu0
    %v2210 = vadd.f32 0.0, %v2209
    %2211 = vmatmul.f32.gmra.mxu0 %v2172
    %v2212 = vpop.f32.mrf.mxu0
    %v2213 = vadd.f32 0.0, %v2212
    %2214 = vmatmul.f32.gmra.mxu0 %v2175
    %v2215 = vpop.f32.mrf.mxu0
    %v2216 = vadd.f32 0.0, %v2215
    %2217 = vmatmul.f32.gmra.mxu0 %v2178
    %v2218 = vpop.f32.mrf.mxu0
    %v2219 = vadd.f32 0.0, %v2218
    %2220 = vmatmul.f32.gmra.mxu0 %v2181
    %v2221 = vpop.f32.mrf.mxu0
    %v2222 = vadd.f32 0.0, %v2221
    %2223 = vmatmul.f32.gmra.mxu0 %v2184
    %v2224 = vpop.f32.mrf.mxu0
    %v2225 = vadd.f32 0.0, %v2224
    %2226 = vmatmul.f32.gmra.mxu0 %v2187
    %v2227 = vpop.f32.mrf.mxu0
    %v2228 = vadd.f32 0.0, %v2227
    %2229 = vmatmul.f32.gmra.mxu0 %v2190
    %v2230 = vpop.f32.mrf.mxu0
    %v2231 = vadd.f32 0.0, %v2230
    %2232 = vdwg.mxu0
    %v2233 = vrcp.pop %v2009
    %v2234 = vrcp.pop %v2012
    %v2235 = vrcp.pop %v2015
    %v2236 = vrcp.pop %v2018
    %v2237 = vrcp.pop %v2021
    %v2238 = vrcp.pop %v2024
    %v2239 = vrcp.pop %v2027
    %v2240 = vrcp.pop %v2030
    %v2241 = vrcp.pop %v2033
    %v2242 = vrcp.pop %v2036
    %v2243 = vrcp.pop %v2039
    %v2244 = vrcp.pop %v2042
    %v2245 = vrcp.pop %v2045
    %v2246 = vrcp.pop %v2048
    %v2247 = vrcp.pop %v2051
    %v2248 = vrcp.pop %v2054
    %v2249 = vmul.f32 %v2121, %v2233
    %v2250 = vmul.f32 %v2124, %v2234
    %v2251 = vmul.f32 %v2127, %v2235
    %v2252 = vmul.f32 %v2130, %v2236
    %v2253 = vmul.f32 %v2133, %v2237
    %v2254 = vmul.f32 %v2136, %v2238
    %v2255 = vmul.f32 %v2139, %v2239
    %v2256 = vmul.f32 %v2142, %v2240
    %v2257 = vmul.f32 %v2210, %v2241
    %v2258 = vmul.f32 %v2213, %v2242
    %v2259 = vmul.f32 %v2216, %v2243
    %v2260 = vmul.f32 %v2219, %v2244
    %v2261 = vmul.f32 %v2222, %v2245
    %v2262 = vmul.f32 %v2225, %v2246
    %v2263 = vmul.f32 %v2228, %v2247
    %v2264 = vmul.f32 %v2231, %v2248
    %v2265 = vld [vmem:[#allocation8 + $0x40] sm:$0xff]
    %v2266 = vld [vmem:[#allocation8 + $0x48] sm:$0xff]
    %v2267 = vld [vmem:[#allocation8 + $0x50] sm:$0xff]
    %v2268 = vld [vmem:[#allocation8 + $0x58] sm:$0xff]
    %v2270 = vsel %vm369, %v2249, 0
    %v2273 = vsel %vm369, %v2250, 0
    %v2276 = vsel %vm369, %v2251, 0
    %v2279 = vsel %vm369, %v2252, 0
    %v2282 = vsel %vm369, %v2253, 0
    %v2285 = vsel %vm369, %v2254, 0
    %v2288 = vsel %vm369, %v2255, 0
    %v2291 = vsel %vm369, %v2256, 0
    %v2294 = vsel %vm369, %v2257, 0
    %v2297 = vsel %vm369, %v2258, 0
    %v2300 = vsel %vm369, %v2259, 0
    %v2303 = vsel %vm369, %v2260, 0
    %v2306 = vsel %vm369, %v2261, 0
    %v2309 = vsel %vm369, %v2262, 0
    %v2312 = vsel %vm369, %v2263, 0
    %v2315 = vsel %vm369, %v2264, 0
    %2317 = vmatpush.msra.mxu0 0.0
    %2318 = vmatpush.msra.mxu0 0.0
    %2319 = vmatpush.msra.mxu0 0.0
    %2320 = vmatpush.msra.mxu0 0.0
    %2321 = vmatpush.msra.mxu0 0.0
    %2322 = vmatpush.msra.mxu0 0.0
    %2323 = vmatpush.msra.mxu0 0.0
    %2324 = vmatpush.msra.mxu0 0.0
    %2325 = vmatpush.msra.mxu0 0.0
    %2326 = vmatpush.msra.mxu0 0.0
    %2327 = vmatpush.msra.mxu0 0.0
    %2328 = vmatpush.msra.mxu0 0.0
    %2329 = vmatpush.msra.mxu0 %v2268
    %2330 = vmatpush.msra.mxu0 %v2267
    %2331 = vmatpush.msra.mxu0 %v2266
    %2332 = vmatpush.msra.mxu0 %v2265
    %2333 = vmatmul.f32.gmra.mxu0 %v2270
    %v2334 = vpop.f32.mrf.mxu0
    %v2335 = vadd.f32 0.0, %v2334
    %2336 = vmatmul.f32.gmra.mxu0 %v2273
    %v2337 = vpop.f32.mrf.mxu0
    %v2338 = vadd.f32 0.0, %v2337
    %2339 = vmatmul.f32.gmra.mxu0 %v2276
    %v2340 = vpop.f32.mrf.mxu0
    %v2341 = vadd.f32 0.0, %v2340
    %2342 = vmatmul.f32.gmra.mxu0 %v2279
    %v2343 = vpop.f32.mrf.mxu0
    %v2344 = vadd.f32 0.0, %v2343
    %2345 = vmatmul.f32.gmra.mxu0 %v2282
    %v2346 = vpop.f32.mrf.mxu0
    %v2347 = vadd.f32 0.0, %v2346
    %2348 = vmatmul.f32.gmra.mxu0 %v2285
    %v2349 = vpop.f32.mrf.mxu0
    %v2350 = vadd.f32 0.0, %v2349
    %2351 = vmatmul.f32.gmra.mxu0 %v2288
    %v2352 = vpop.f32.mrf.mxu0
    %v2353 = vadd.f32 0.0, %v2352
    %2354 = vmatmul.f32.gmra.mxu0 %v2291
    %v2355 = vpop.f32.mrf.mxu0
    %v2356 = vadd.f32 0.0, %v2355
    %2357 = vmatmul.f32.gmra.mxu0 %v2294
    %v2358 = vpop.f32.mrf.mxu0
    %v2359 = vadd.f32 0.0, %v2358
    %2360 = vmatmul.f32.gmra.mxu0 %v2297
    %v2361 = vpop.f32.mrf.mxu0
    %v2362 = vadd.f32 0.0, %v2361
    %2363 = vmatmul.f32.gmra.mxu0 %v2300
    %v2364 = vpop.f32.mrf.mxu0
    %v2365 = vadd.f32 0.0, %v2364
    %2366 = vmatmul.f32.gmra.mxu0 %v2303
    %v2367 = vpop.f32.mrf.mxu0
    %v2368 = vadd.f32 0.0, %v2367
    %2369 = vmatmul.f32.gmra.mxu0 %v2306
    %v2370 = vpop.f32.mrf.mxu0
    %v2371 = vadd.f32 0.0, %v2370
    %2372 = vmatmul.f32.gmra.mxu0 %v2309
    %v2373 = vpop.f32.mrf.mxu0
    %v2374 = vadd.f32 0.0, %v2373
    %2375 = vmatmul.f32.gmra.mxu0 %v2312
    %v2376 = vpop.f32.mrf.mxu0
    %v2377 = vadd.f32 0.0, %v2376
    %2378 = vmatmul.f32.gmra.mxu0 %v2315
    %v2379 = vpop.f32.mrf.mxu0
    %v2380 = vadd.f32 0.0, %v2379
    %2381 = vdwg.mxu0
    %v2382 = vadd.f32 %v1685, %v2335
    %v2383 = vadd.f32 %v1686, %v2338
    %v2384 = vadd.f32 %v1687, %v2341
    %v2385 = vadd.f32 %v1688, %v2344
    %v2386 = vadd.f32 %v1689, %v2347
    %v2387 = vadd.f32 %v1690, %v2350
    %v2388 = vadd.f32 %v1691, %v2353
    %v2389 = vadd.f32 %v1692, %v2356
    %v2390 = vadd.f32 %v1693, %v2359
    %v2391 = vadd.f32 %v1694, %v2362
    %v2392 = vadd.f32 %v1695, %v2365
    %v2393 = vadd.f32 %v1696, %v2368
    %v2394 = vadd.f32 %v1697, %v2371
    %v2395 = vadd.f32 %v1698, %v2374
    %v2396 = vadd.f32 %v1699, %v2377
    %v2397 = vadd.f32 %v1700, %v2380
    %2398 = vrot.lane.b32.xlu0 %v172, 32
    %v2399 = vpop.permute.xlu0 %2398
    %2400 = vrot.lane.b32.xlu0 %v175, 32
    %v2401 = vpop.permute.xlu0 %2400
    %2402 = vrot.lane.b32.xlu0 %v178, 32
    %v2403 = vpop.permute.xlu0 %2402
    %2404 = vrot.lane.b32.xlu0 %v181, 32
    %v2405 = vpop.permute.xlu0 %2404
    %2406 = vrot.lane.b32.xlu0 %v184, 32
    %v2407 = vpop.permute.xlu0 %2406
    %2408 = vrot.lane.b32.xlu0 %v187, 32
    %v2409 = vpop.permute.xlu0 %2408
    %2410 = vrot.lane.b32.xlu0 %v190, 32
    %v2411 = vpop.permute.xlu0 %2410
    %2412 = vrot.lane.b32.xlu0 %v193, 32
    %v2413 = vpop.permute.xlu0 %2412
    %2414 = vrot.lane.b32.xlu0 %v237, 32
    %v2415 = vpop.permute.xlu0 %2414
    %2416 = vrot.lane.b32.xlu0 %v240, 32
    %v2417 = vpop.permute.xlu0 %2416
    %2418 = vrot.lane.b32.xlu0 %v243, 32
    %v2419 = vpop.permute.xlu0 %2418
    %2420 = vrot.lane.b32.xlu0 %v246, 32
    %v2421 = vpop.permute.xlu0 %2420
    %2422 = vrot.lane.b32.xlu0 %v249, 32
    %v2423 = vpop.permute.xlu0 %2422
    %2424 = vrot.lane.b32.xlu0 %v252, 32
    %v2425 = vpop.permute.xlu0 %2424
    %2426 = vrot.lane.b32.xlu0 %v255, 32
    %v2427 = vpop.permute.xlu0 %2426
    %2428 = vrot.lane.b32.xlu0 %v258, 32
    %v2429 = vpop.permute.xlu0 %2428
    %v2430 = vsel %vm369, %v2399, 0
    %v2432 = vsel %vm369, %v2401, 0
    %v2434 = vsel %vm369, %v2403, 0
    %v2436 = vsel %vm369, %v2405, 0
    %v2438 = vsel %vm369, %v2407, 0
    %v2440 = vsel %vm369, %v2409, 0
    %v2442 = vsel %vm369, %v2411, 0
    %v2444 = vsel %vm369, %v2413, 0
    %v2446 = vsel %vm369, %v2415, 0
    %v2448 = vsel %vm369, %v2417, 0
    %v2450 = vsel %vm369, %v2419, 0
    %v2452 = vsel %vm369, %v2421, 0
    %v2454 = vsel %vm369, %v2423, 0
    %v2456 = vsel %vm369, %v2425, 0
    %v2458 = vsel %vm369, %v2427, 0
    %v2460 = vsel %vm369, %v2429, 0
    %2462 = vmatpush.xpose.msra.mxu0 0.0
    %2463 = vmatpush.xpose.msra.mxu0 0.0
    %2464 = vmatpush.xpose.msra.mxu0 0.0
    %2465 = vmatpush.xpose.msra.mxu0 0.0
    %2466 = vmatpush.xpose.msra.mxu0 0.0
    %2467 = vmatpush.xpose.msra.mxu0 0.0
    %2468 = vmatpush.xpose.msra.mxu0 0.0
    %2469 = vmatpush.xpose.msra.mxu0 0.0
    %2470 = vmatpush.xpose.msra.mxu0 %v2460
    %2471 = vmatpush.xpose.msra.mxu0 %v2458
    %2472 = vmatpush.xpose.msra.mxu0 %v2456
    %2473 = vmatpush.xpose.msra.mxu0 %v2454
    %2474 = vmatpush.xpose.msra.mxu0 %v2452
    %2475 = vmatpush.xpose.msra.mxu0 %v2450
    %2476 = vmatpush.xpose.msra.mxu0 %v2448
    %2477 = vmatpush.xpose.msra.mxu0 %v2446
    %2478 = vmatmul.f32.gmra.mxu0 %v2430
    %v2479 = vpop.f32.mrf.mxu0
    %v2480 = vadd.f32 0.0, %v2479
    %2481 = vmatmul.f32.gmra.mxu0 %v2432
    %v2482 = vpop.f32.mrf.mxu0
    %v2483 = vadd.f32 0.0, %v2482
    %2484 = vmatmul.f32.gmra.mxu0 %v2434
    %v2485 = vpop.f32.mrf.mxu0
    %v2486 = vadd.f32 0.0, %v2485
    %2487 = vmatmul.f32.gmra.mxu0 %v2436
    %v2488 = vpop.f32.mrf.mxu0
    %v2489 = vadd.f32 0.0, %v2488
    %2490 = vmatmul.f32.gmra.mxu0 %v2438
    %v2491 = vpop.f32.mrf.mxu0
    %v2492 = vadd.f32 0.0, %v2491
    %2493 = vmatmul.f32.gmra.mxu0 %v2440
    %v2494 = vpop.f32.mrf.mxu0
    %v2495 = vadd.f32 0.0, %v2494
    %2496 = vmatmul.f32.gmra.mxu0 %v2442
    %v2497 = vpop.f32.mrf.mxu0
    %v2498 = vadd.f32 0.0, %v2497
    %2499 = vmatmul.f32.gmra.mxu0 %v2444
    %v2500 = vpop.f32.mrf.mxu0
    %v2501 = vadd.f32 0.0, %v2500
    %2502 = vdwg.mxu0
    %2503 = vrot.lane.b32.xlu0 %v196, 32
    %v2504 = vpop.permute.xlu0 %2503
    %2505 = vrot.lane.b32.xlu0 %v199, 32
    %v2506 = vpop.permute.xlu0 %2505
    %2507 = vrot.lane.b32.xlu0 %v202, 32
    %v2508 = vpop.permute.xlu0 %2507
    %2509 = vrot.lane.b32.xlu0 %v205, 32
    %v2510 = vpop.permute.xlu0 %2509
    %2511 = vrot.lane.b32.xlu0 %v208, 32
    %v2512 = vpop.permute.xlu0 %2511
    %2513 = vrot.lane.b32.xlu0 %v211, 32
    %v2514 = vpop.permute.xlu0 %2513
    %2515 = vrot.lane.b32.xlu0 %v214, 32
    %v2516 = vpop.permute.xlu0 %2515
    %2517 = vrot.lane.b32.xlu0 %v217, 32
    %v2518 = vpop.permute.xlu0 %2517
    %2519 = vrot.lane.b32.xlu0 %v261, 32
    %v2520 = vpop.permute.xlu0 %2519
    %2521 = vrot.lane.b32.xlu0 %v264, 32
    %v2522 = vpop.permute.xlu0 %2521
    %2523 = vrot.lane.b32.xlu0 %v267, 32
    %v2524 = vpop.permute.xlu0 %2523
    %2525 = vrot.lane.b32.xlu0 %v270, 32
    %v2526 = vpop.permute.xlu0 %2525
    %2527 = vrot.lane.b32.xlu0 %v273, 32
    %v2528 = vpop.permute.xlu0 %2527
    %2529 = vrot.lane.b32.xlu0 %v276, 32
    %v2530 = vpop.permute.xlu0 %2529
    %2531 = vrot.lane.b32.xlu0 %v279, 32
    %v2532 = vpop.permute.xlu0 %2531
    %2533 = vrot.lane.b32.xlu0 %v282, 32
    %v2534 = vpop.permute.xlu0 %2533
    %v2535 = vsel %vm369, %v2504, 0
    %v2537 = vsel %vm369, %v2506, 0
    %v2539 = vsel %vm369, %v2508, 0
    %v2541 = vsel %vm369, %v2510, 0
    %v2543 = vsel %vm369, %v2512, 0
    %v2545 = vsel %vm369, %v2514, 0
    %v2547 = vsel %vm369, %v2516, 0
    %v2549 = vsel %vm369, %v2518, 0
    %v2551 = vsel %vm369, %v2520, 0
    %v2553 = vsel %vm369, %v2522, 0
    %v2555 = vsel %vm369, %v2524, 0
    %v2557 = vsel %vm369, %v2526, 0
    %v2559 = vsel %vm369, %v2528, 0
    %v2561 = vsel %vm369, %v2530, 0
    %v2563 = vsel %vm369, %v2532, 0
    %v2565 = vsel %vm369, %v2534, 0
    %2567 = vmatpush.xpose.msra.mxu0 0.0
    %2568 = vmatpush.xpose.msra.mxu0 0.0
    %2569 = vmatpush.xpose.msra.mxu0 0.0
    %2570 = vmatpush.xpose.msra.mxu0 0.0
    %2571 = vmatpush.xpose.msra.mxu0 0.0
    %2572 = vmatpush.xpose.msra.mxu0 0.0
    %2573 = vmatpush.xpose.msra.mxu0 0.0
    %2574 = vmatpush.xpose.msra.mxu0 0.0
    %2575 = vmatpush.xpose.msra.mxu0 %v2565
    %2576 = vmatpush.xpose.msra.mxu0 %v2563
    %2577 = vmatpush.xpose.msra.mxu0 %v2561
    %2578 = vmatpush.xpose.msra.mxu0 %v2559
    %2579 = vmatpush.xpose.msra.mxu0 %v2557
    %2580 = vmatpush.xpose.msra.mxu0 %v2555
    %2581 = vmatpush.xpose.msra.mxu0 %v2553
    %2582 = vmatpush.xpose.msra.mxu0 %v2551
    %2583 = vmatmul.f32.gmra.mxu0 %v2535
    %v2584 = vpop.f32.mrf.mxu0
    %v2585 = vadd.f32 0.0, %v2584
    %2586 = vmatmul.f32.gmra.mxu0 %v2537
    %v2587 = vpop.f32.mrf.mxu0
    %v2588 = vadd.f32 0.0, %v2587
    %2589 = vmatmul.f32.gmra.mxu0 %v2539
    %v2590 = vpop.f32.mrf.mxu0
    %v2591 = vadd.f32 0.0, %v2590
    %2592 = vmatmul.f32.gmra.mxu0 %v2541
    %v2593 = vpop.f32.mrf.mxu0
    %v2594 = vadd.f32 0.0, %v2593
    %2595 = vmatmul.f32.gmra.mxu0 %v2543
    %v2596 = vpop.f32.mrf.mxu0
    %v2597 = vadd.f32 0.0, %v2596
    %2598 = vmatmul.f32.gmra.mxu0 %v2545
    %v2599 = vpop.f32.mrf.mxu0
    %v2600 = vadd.f32 0.0, %v2599
    %2601 = vmatmul.f32.gmra.mxu0 %v2547
    %v2602 = vpop.f32.mrf.mxu0
    %v2603 = vadd.f32 0.0, %v2602
    %2604 = vmatmul.f32.gmra.mxu0 %v2549
    %v2605 = vpop.f32.mrf.mxu0
    %v2606 = vadd.f32 0.0, %v2605
    %2607 = vdwg.mxu0
    %v2608 = vsel %vm548, %v2480, -inf
    %2609 = vmax.xlane.f32.xlu0 %v2608
    %v2610 = vpop.xlane.xlu0 %2609
    %v2611 = vsel %vm548, %v2483, -inf
    %2612 = vmax.xlane.f32.xlu0 %v2611
    %v2613 = vpop.xlane.xlu0 %2612
    %v2614 = vsel %vm548, %v2486, -inf
    %2615 = vmax.xlane.f32.xlu0 %v2614
    %v2616 = vpop.xlane.xlu0 %2615
    %v2617 = vsel %vm548, %v2489, -inf
    %2618 = vmax.xlane.f32.xlu0 %v2617
    %v2619 = vpop.xlane.xlu0 %2618
    %v2620 = vsel %vm548, %v2492, -inf
    %2621 = vmax.xlane.f32.xlu0 %v2620
    %v2622 = vpop.xlane.xlu0 %2621
    %v2623 = vsel %vm548, %v2495, -inf
    %2624 = vmax.xlane.f32.xlu0 %v2623
    %v2625 = vpop.xlane.xlu0 %2624
    %v2626 = vsel %vm548, %v2498, -inf
    %2627 = vmax.xlane.f32.xlu0 %v2626
    %v2628 = vpop.xlane.xlu0 %2627
    %v2629 = vsel %vm548, %v2501, -inf
    %2630 = vmax.xlane.f32.xlu0 %v2629
    %v2631 = vpop.xlane.xlu0 %2630
    %v2632 = vsel %vm548, %v2585, -inf
    %2633 = vmax.xlane.f32.xlu0 %v2632
    %v2634 = vpop.xlane.xlu0 %2633
    %v2635 = vsel %vm548, %v2588, -inf
    %2636 = vmax.xlane.f32.xlu0 %v2635
    %v2637 = vpop.xlane.xlu0 %2636
    %v2638 = vsel %vm548, %v2591, -inf
    %2639 = vmax.xlane.f32.xlu0 %v2638
    %v2640 = vpop.xlane.xlu0 %2639
    %v2641 = vsel %vm548, %v2594, -inf
    %2642 = vmax.xlane.f32.xlu0 %v2641
    %v2643 = vpop.xlane.xlu0 %2642
    %v2644 = vsel %vm548, %v2597, -inf
    %2645 = vmax.xlane.f32.xlu0 %v2644
    %v2646 = vpop.xlane.xlu0 %2645
    %v2647 = vsel %vm548, %v2600, -inf
    %2648 = vmax.xlane.f32.xlu0 %v2647
    %v2649 = vpop.xlane.xlu0 %2648
    %v2650 = vsel %vm548, %v2603, -inf
    %2651 = vmax.xlane.f32.xlu0 %v2650
    %v2652 = vpop.xlane.xlu0 %2651
    %v2653 = vsel %vm548, %v2606, -inf
    %2654 = vmax.xlane.f32.xlu0 %v2653
    %v2655 = vpop.xlane.xlu0 %2654
    %v2656 = vsub.f32 %v2480, %v2610
    %v2657 = vsub.f32 %v2483, %v2613
    %v2658 = vsub.f32 %v2486, %v2616
    %v2659 = vsub.f32 %v2489, %v2619
    %v2660 = vsub.f32 %v2492, %v2622
    %v2661 = vsub.f32 %v2495, %v2625
    %v2662 = vsub.f32 %v2498, %v2628
    %v2663 = vsub.f32 %v2501, %v2631
    %v2664 = vsub.f32 %v2585, %v2634
    %v2665 = vsub.f32 %v2588, %v2637
    %v2666 = vsub.f32 %v2591, %v2640
    %v2667 = vsub.f32 %v2594, %v2643
    %v2668 = vsub.f32 %v2597, %v2646
    %v2669 = vsub.f32 %v2600, %v2649
    %v2670 = vsub.f32 %v2603, %v2652
    %v2671 = vsub.f32 %v2606, %v2655
    %v2672 = vmul.f32 %v2656, 1.442695
    %v2673 = vpow.pop %v2672
    %v2674 = vmul.f32 %v2657, 1.442695
    %v2675 = vpow.pop %v2674
    %v2676 = vmul.f32 %v2658, 1.442695
    %v2677 = vpow.pop %v2676
    %v2678 = vmul.f32 %v2659, 1.442695
    %v2679 = vpow.pop %v2678
    %v2680 = vmul.f32 %v2660, 1.442695
    %v2681 = vpow.pop %v2680
    %v2682 = vmul.f32 %v2661, 1.442695
    %v2683 = vpow.pop %v2682
    %v2684 = vmul.f32 %v2662, 1.442695
    %v2685 = vpow.pop %v2684
    %v2686 = vmul.f32 %v2663, 1.442695
    %v2687 = vpow.pop %v2686
    %v2688 = vmul.f32 %v2664, 1.442695
    %v2689 = vpow.pop %v2688
    %v2690 = vmul.f32 %v2665, 1.442695
    %v2691 = vpow.pop %v2690
    %v2692 = vmul.f32 %v2666, 1.442695
    %v2693 = vpow.pop %v2692
    %v2694 = vmul.f32 %v2667, 1.442695
    %v2695 = vpow.pop %v2694
    %v2696 = vmul.f32 %v2668, 1.442695
    %v2697 = vpow.pop %v2696
    %v2698 = vmul.f32 %v2669, 1.442695
    %v2699 = vpow.pop %v2698
    %v2700 = vmul.f32 %v2670, 1.442695
    %v2701 = vpow.pop %v2700
    %v2702 = vmul.f32 %v2671, 1.442695
    %v2703 = vpow.pop %v2702
    %v2704 = vsel %vm548, %v2673, 0.0
    %2705 = vadd.xlane.f32.xlu0 %v2704
    %v2706 = vpop.xlane.xlu0 %2705
    %v2707 = vsel %vm548, %v2675, 0.0
    %2708 = vadd.xlane.f32.xlu0 %v2707
    %v2709 = vpop.xlane.xlu0 %2708
    %v2710 = vsel %vm548, %v2677, 0.0
    %2711 = vadd.xlane.f32.xlu0 %v2710
    %v2712 = vpop.xlane.xlu0 %2711
    %v2713 = vsel %vm548, %v2679, 0.0
    %2714 = vadd.xlane.f32.xlu0 %v2713
    %v2715 = vpop.xlane.xlu0 %2714
    %v2716 = vsel %vm548, %v2681, 0.0
    %2717 = vadd.xlane.f32.xlu0 %v2716
    %v2718 = vpop.xlane.xlu0 %2717
    %v2719 = vsel %vm548, %v2683, 0.0
    %2720 = vadd.xlane.f32.xlu0 %v2719
    %v2721 = vpop.xlane.xlu0 %2720
    %v2722 = vsel %vm548, %v2685, 0.0
    %2723 = vadd.xlane.f32.xlu0 %v2722
    %v2724 = vpop.xlane.xlu0 %2723
    %v2725 = vsel %vm548, %v2687, 0.0
    %2726 = vadd.xlane.f32.xlu0 %v2725
    %v2727 = vpop.xlane.xlu0 %2726
    %v2728 = vsel %vm548, %v2689, 0.0
    %2729 = vadd.xlane.f32.xlu0 %v2728
    %v2730 = vpop.xlane.xlu0 %2729
    %v2731 = vsel %vm548, %v2691, 0.0
    %2732 = vadd.xlane.f32.xlu0 %v2731
    %v2733 = vpop.xlane.xlu0 %2732
    %v2734 = vsel %vm548, %v2693, 0.0
    %2735 = vadd.xlane.f32.xlu0 %v2734
    %v2736 = vpop.xlane.xlu0 %2735
    %v2737 = vsel %vm548, %v2695, 0.0
    %2738 = vadd.xlane.f32.xlu0 %v2737
    %v2739 = vpop.xlane.xlu0 %2738
    %v2740 = vsel %vm548, %v2697, 0.0
    %2741 = vadd.xlane.f32.xlu0 %v2740
    %v2742 = vpop.xlane.xlu0 %2741
    %v2743 = vsel %vm548, %v2699, 0.0
    %2744 = vadd.xlane.f32.xlu0 %v2743
    %v2745 = vpop.xlane.xlu0 %2744
    %v2746 = vsel %vm548, %v2701, 0.0
    %2747 = vadd.xlane.f32.xlu0 %v2746
    %v2748 = vpop.xlane.xlu0 %2747
    %v2749 = vsel %vm548, %v2703, 0.0
    %2750 = vadd.xlane.f32.xlu0 %v2749
    %v2751 = vpop.xlane.xlu0 %2750
    %2752 = vrot.lane.b32.xlu0 %v302, 32
    %v2753 = vpop.permute.xlu0 %2752
    %2754 = vrot.lane.b32.xlu0 %v305, 32
    %v2755 = vpop.permute.xlu0 %2754
    %2756 = vrot.lane.b32.xlu0 %v308, 32
    %v2757 = vpop.permute.xlu0 %2756
    %2758 = vrot.lane.b32.xlu0 %v311, 32
    %v2759 = vpop.permute.xlu0 %2758
    %2760 = vrot.lane.b32.xlu0 %v314, 32
    %v2761 = vpop.permute.xlu0 %2760
    %2762 = vrot.lane.b32.xlu0 %v317, 32
    %v2763 = vpop.permute.xlu0 %2762
    %2764 = vrot.lane.b32.xlu0 %v320, 32
    %v2765 = vpop.permute.xlu0 %2764
    %2766 = vrot.lane.b32.xlu0 %v323, 32
    %v2767 = vpop.permute.xlu0 %2766
    %v2777 = vsel %vm548, %v2673, 0
    %v2780 = vsel %vm548, %v2675, 0
    %v2783 = vsel %vm548, %v2677, 0
    %v2786 = vsel %vm548, %v2679, 0
    %v2789 = vsel %vm548, %v2681, 0
    %v2792 = vsel %vm548, %v2683, 0
    %v2795 = vsel %vm548, %v2685, 0
    %v2798 = vsel %vm548, %v2687, 0
    %2800 = vmatpush.msra.mxu0 0.0
    %2801 = vmatpush.msra.mxu0 0.0
    %2802 = vmatpush.msra.mxu0 0.0
    %2803 = vmatpush.msra.mxu0 0.0
    %2804 = vmatpush.msra.mxu0 0.0
    %2805 = vmatpush.msra.mxu0 0.0
    %2806 = vmatpush.msra.mxu0 0.0
    %2807 = vmatpush.msra.mxu0 0.0
    %2808 = vmatpush.msra.mxu0 %v2767
    %2809 = vmatpush.msra.mxu0 %v2765
    %2810 = vmatpush.msra.mxu0 %v2763
    %2811 = vmatpush.msra.mxu0 %v2761
    %2812 = vmatpush.msra.mxu0 %v2759
    %2813 = vmatpush.msra.mxu0 %v2757
    %2814 = vmatpush.msra.mxu0 %v2755
    %2815 = vmatpush.msra.mxu0 %v2753
    %2816 = vmatmul.f32.gmra.mxu0 %v2777
    %v2817 = vpop.f32.mrf.mxu0
    %v2818 = vadd.f32 0.0, %v2817
    %2819 = vmatmul.f32.gmra.mxu0 %v2780
    %v2820 = vpop.f32.mrf.mxu0
    %v2821 = vadd.f32 0.0, %v2820
    %2822 = vmatmul.f32.gmra.mxu0 %v2783
    %v2823 = vpop.f32.mrf.mxu0
    %v2824 = vadd.f32 0.0, %v2823
    %2825 = vmatmul.f32.gmra.mxu0 %v2786
    %v2826 = vpop.f32.mrf.mxu0
    %v2827 = vadd.f32 0.0, %v2826
    %2828 = vmatmul.f32.gmra.mxu0 %v2789
    %v2829 = vpop.f32.mrf.mxu0
    %v2830 = vadd.f32 0.0, %v2829
    %2831 = vmatmul.f32.gmra.mxu0 %v2792
    %v2832 = vpop.f32.mrf.mxu0
    %v2833 = vadd.f32 0.0, %v2832
    %2834 = vmatmul.f32.gmra.mxu0 %v2795
    %v2835 = vpop.f32.mrf.mxu0
    %v2836 = vadd.f32 0.0, %v2835
    %2837 = vmatmul.f32.gmra.mxu0 %v2798
    %v2838 = vpop.f32.mrf.mxu0
    %v2839 = vadd.f32 0.0, %v2838
    %2840 = vdwg.mxu0
    %2841 = vrot.lane.b32.xlu0 %v326, 32
    %v2842 = vpop.permute.xlu0 %2841
    %2843 = vrot.lane.b32.xlu0 %v329, 32
    %v2844 = vpop.permute.xlu0 %2843
    %2845 = vrot.lane.b32.xlu0 %v332, 32
    %v2846 = vpop.permute.xlu0 %2845
    %2847 = vrot.lane.b32.xlu0 %v335, 32
    %v2848 = vpop.permute.xlu0 %2847
    %2849 = vrot.lane.b32.xlu0 %v338, 32
    %v2850 = vpop.permute.xlu0 %2849
    %2851 = vrot.lane.b32.xlu0 %v341, 32
    %v2852 = vpop.permute.xlu0 %2851
    %2853 = vrot.lane.b32.xlu0 %v344, 32
    %v2854 = vpop.permute.xlu0 %2853
    %2855 = vrot.lane.b32.xlu0 %v347, 32
    %v2856 = vpop.permute.xlu0 %2855
    %v2866 = vsel %vm548, %v2689, 0
    %v2869 = vsel %vm548, %v2691, 0
    %v2872 = vsel %vm548, %v2693, 0
    %v2875 = vsel %vm548, %v2695, 0
    %v2878 = vsel %vm548, %v2697, 0
    %v2881 = vsel %vm548, %v2699, 0
    %v2884 = vsel %vm548, %v2701, 0
    %v2887 = vsel %vm548, %v2703, 0
    %2889 = vmatpush.msra.mxu0 0.0
    %2890 = vmatpush.msra.mxu0 0.0
    %2891 = vmatpush.msra.mxu0 0.0
    %2892 = vmatpush.msra.mxu0 0.0
    %2893 = vmatpush.msra.mxu0 0.0
    %2894 = vmatpush.msra.mxu0 0.0
    %2895 = vmatpush.msra.mxu0 0.0
    %2896 = vmatpush.msra.mxu0 0.0
    %2897 = vmatpush.msra.mxu0 %v2856
    %2898 = vmatpush.msra.mxu0 %v2854
    %2899 = vmatpush.msra.mxu0 %v2852
    %2900 = vmatpush.msra.mxu0 %v2850
    %2901 = vmatpush.msra.mxu0 %v2848
    %2902 = vmatpush.msra.mxu0 %v2846
    %2903 = vmatpush.msra.mxu0 %v2844
    %2904 = vmatpush.msra.mxu0 %v2842
    %2905 = vmatmul.f32.gmra.mxu0 %v2866
    %v2906 = vpop.f32.mrf.mxu0
    %v2907 = vadd.f32 0.0, %v2906
    %2908 = vmatmul.f32.gmra.mxu0 %v2869
    %v2909 = vpop.f32.mrf.mxu0
    %v2910 = vadd.f32 0.0, %v2909
    %2911 = vmatmul.f32.gmra.mxu0 %v2872
    %v2912 = vpop.f32.mrf.mxu0
    %v2913 = vadd.f32 0.0, %v2912
    %2914 = vmatmul.f32.gmra.mxu0 %v2875
    %v2915 = vpop.f32.mrf.mxu0
    %v2916 = vadd.f32 0.0, %v2915
    %2917 = vmatmul.f32.gmra.mxu0 %v2878
    %v2918 = vpop.f32.mrf.mxu0
    %v2919 = vadd.f32 0.0, %v2918
    %2920 = vmatmul.f32.gmra.mxu0 %v2881
    %v2921 = vpop.f32.mrf.mxu0
    %v2922 = vadd.f32 0.0, %v2921
    %2923 = vmatmul.f32.gmra.mxu0 %v2884
    %v2924 = vpop.f32.mrf.mxu0
    %v2925 = vadd.f32 0.0, %v2924
    %2926 = vmatmul.f32.gmra.mxu0 %v2887
    %v2927 = vpop.f32.mrf.mxu0
    %v2928 = vadd.f32 0.0, %v2927
    %2929 = vdwg.mxu0
    %v2930 = vrcp.pop %v2706
    %v2931 = vrcp.pop %v2709
    %v2932 = vrcp.pop %v2712
    %v2933 = vrcp.pop %v2715
    %v2934 = vrcp.pop %v2718
    %v2935 = vrcp.pop %v2721
    %v2936 = vrcp.pop %v2724
    %v2937 = vrcp.pop %v2727
    %v2938 = vrcp.pop %v2730
    %v2939 = vrcp.pop %v2733
    %v2940 = vrcp.pop %v2736
    %v2941 = vrcp.pop %v2739
    %v2942 = vrcp.pop %v2742
    %v2943 = vrcp.pop %v2745
    %v2944 = vrcp.pop %v2748
    %v2945 = vrcp.pop %v2751
    %v2946 = vmul.f32 %v2818, %v2930
    %v2947 = vmul.f32 %v2821, %v2931
    %v2948 = vmul.f32 %v2824, %v2932
    %v2949 = vmul.f32 %v2827, %v2933
    %v2950 = vmul.f32 %v2830, %v2934
    %v2951 = vmul.f32 %v2833, %v2935
    %v2952 = vmul.f32 %v2836, %v2936
    %v2953 = vmul.f32 %v2839, %v2937
    %v2954 = vmul.f32 %v2907, %v2938
    %v2955 = vmul.f32 %v2910, %v2939
    %v2956 = vmul.f32 %v2913, %v2940
    %v2957 = vmul.f32 %v2916, %v2941
    %v2958 = vmul.f32 %v2919, %v2942
    %v2959 = vmul.f32 %v2922, %v2943
    %v2960 = vmul.f32 %v2925, %v2944
    %v2961 = vmul.f32 %v2928, %v2945
    %v2962 = vld [vmem:[#allocation8 + $0x60] sm:$0xff]
    %v2963 = vld [vmem:[#allocation8 + $0x68] sm:$0xff]
    %v2964 = vld [vmem:[#allocation8 + $0x70] sm:$0xff]
    %v2965 = vld [vmem:[#allocation8 + $0x78] sm:$0xff]
    %v2967 = vsel %vm369, %v2946, 0
    %v2970 = vsel %vm369, %v2947, 0
    %v2973 = vsel %vm369, %v2948, 0
    %v2976 = vsel %vm369, %v2949, 0
    %v2979 = vsel %vm369, %v2950, 0
    %v2982 = vsel %vm369, %v2951, 0
    %v2985 = vsel %vm369, %v2952, 0
    %v2988 = vsel %vm369, %v2953, 0
    %v2991 = vsel %vm369, %v2954, 0
    %v2994 = vsel %vm369, %v2955, 0
    %v2997 = vsel %vm369, %v2956, 0
    %v3000 = vsel %vm369, %v2957, 0
    %v3003 = vsel %vm369, %v2958, 0
    %v3006 = vsel %vm369, %v2959, 0
    %v3009 = vsel %vm369, %v2960, 0
    %v3012 = vsel %vm369, %v2961, 0
    %3014 = vmatpush.msra.mxu0 0.0
    %3015 = vmatpush.msra.mxu0 0.0
    %3016 = vmatpush.msra.mxu0 0.0
    %3017 = vmatpush.msra.mxu0 0.0
    %3018 = vmatpush.msra.mxu0 0.0
    %3019 = vmatpush.msra.mxu0 0.0
    %3020 = vmatpush.msra.mxu0 0.0
    %3021 = vmatpush.msra.mxu0 0.0
    %3022 = vmatpush.msra.mxu0 0.0
    %3023 = vmatpush.msra.mxu0 0.0
    %3024 = vmatpush.msra.mxu0 0.0
    %3025 = vmatpush.msra.mxu0 0.0
    %3026 = vmatpush.msra.mxu0 %v2965
    %3027 = vmatpush.msra.mxu0 %v2964
    %3028 = vmatpush.msra.mxu0 %v2963
    %3029 = vmatpush.msra.mxu0 %v2962
    %3030 = vmatmul.f32.gmra.mxu0 %v2967
    %v3031 = vpop.f32.mrf.mxu0
    %v3032 = vadd.f32 0.0, %v3031
    %3033 = vmatmul.f32.gmra.mxu0 %v2970
    %v3034 = vpop.f32.mrf.mxu0
    %v3035 = vadd.f32 0.0, %v3034
    %3036 = vmatmul.f32.gmra.mxu0 %v2973
    %v3037 = vpop.f32.mrf.mxu0
    %v3038 = vadd.f32 0.0, %v3037
    %3039 = vmatmul.f32.gmra.mxu0 %v2976
    %v3040 = vpop.f32.mrf.mxu0
    %v3041 = vadd.f32 0.0, %v3040
    %3042 = vmatmul.f32.gmra.mxu0 %v2979
    %v3043 = vpop.f32.mrf.mxu0
    %v3044 = vadd.f32 0.0, %v3043
    %3045 = vmatmul.f32.gmra.mxu0 %v2982
    %v3046 = vpop.f32.mrf.mxu0
    %v3047 = vadd.f32 0.0, %v3046
    %3048 = vmatmul.f32.gmra.mxu0 %v2985
    %v3049 = vpop.f32.mrf.mxu0
    %v3050 = vadd.f32 0.0, %v3049
    %3051 = vmatmul.f32.gmra.mxu0 %v2988
    %v3052 = vpop.f32.mrf.mxu0
    %v3053 = vadd.f32 0.0, %v3052
    %3054 = vmatmul.f32.gmra.mxu0 %v2991
    %v3055 = vpop.f32.mrf.mxu0
    %v3056 = vadd.f32 0.0, %v3055
    %3057 = vmatmul.f32.gmra.mxu0 %v2994
    %v3058 = vpop.f32.mrf.mxu0
    %v3059 = vadd.f32 0.0, %v3058
    %3060 = vmatmul.f32.gmra.mxu0 %v2997
    %v3061 = vpop.f32.mrf.mxu0
    %v3062 = vadd.f32 0.0, %v3061
    %3063 = vmatmul.f32.gmra.mxu0 %v3000
    %v3064 = vpop.f32.mrf.mxu0
    %v3065 = vadd.f32 0.0, %v3064
    %3066 = vmatmul.f32.gmra.mxu0 %v3003
    %v3067 = vpop.f32.mrf.mxu0
    %v3068 = vadd.f32 0.0, %v3067
    %3069 = vmatmul.f32.gmra.mxu0 %v3006
    %v3070 = vpop.f32.mrf.mxu0
    %v3071 = vadd.f32 0.0, %v3070
    %3072 = vmatmul.f32.gmra.mxu0 %v3009
    %v3073 = vpop.f32.mrf.mxu0
    %v3074 = vadd.f32 0.0, %v3073
    %3075 = vmatmul.f32.gmra.mxu0 %v3012
    %v3076 = vpop.f32.mrf.mxu0
    %v3077 = vadd.f32 0.0, %v3076
    %3078 = vdwg.mxu0
    %v3079 = vadd.f32 %v2382, %v3032
    %v3080 = vadd.f32 %v2383, %v3035
    %v3081 = vadd.f32 %v2384, %v3038
    %v3082 = vadd.f32 %v2385, %v3041
    %v3083 = vadd.f32 %v2386, %v3044
    %v3084 = vadd.f32 %v2387, %v3047
    %v3085 = vadd.f32 %v2388, %v3050
    %v3086 = vadd.f32 %v2389, %v3053
    %v3087 = vadd.f32 %v2390, %v3056
    %v3088 = vadd.f32 %v2391, %v3059
    %v3089 = vadd.f32 %v2392, %v3062
    %v3090 = vadd.f32 %v2393, %v3065
    %v3091 = vadd.f32 %v2394, %v3068
    %v3092 = vadd.f32 %v2395, %v3071
    %v3093 = vadd.f32 %v2396, %v3074
    %v3094 = vadd.f32 %v2397, %v3077
    %3095 = vst [vmem:[#allocation10] sm:$0xff] %v3079
    %3096 = vst [vmem:[#allocation10 + $0x8] sm:$0xff] %v3080
    %3097 = vst [vmem:[#allocation10 + $0x10] sm:$0xff] %v3081
    %3098 = vst [vmem:[#allocation10 + $0x18] sm:$0xff] %v3082
    %3099 = vst [vmem:[#allocation10 + $0x20] sm:$0xff] %v3083
    %3100 = vst [vmem:[#allocation10 + $0x28] sm:$0xff] %v3084
    %3101 = vst [vmem:[#allocation10 + $0x30] sm:$0xff] %v3085
    %3102 = vst [vmem:[#allocation10 + $0x38] sm:$0xff] %v3086
    %3103 = vst [vmem:[#allocation10 + $0x40] sm:$0xff] %v3087
    %3104 = vst [vmem:[#allocation10 + $0x48] sm:$0xff] %v3088
    %3105 = vst [vmem:[#allocation10 + $0x50] sm:$0xff] %v3089
    %3106 = vst [vmem:[#allocation10 + $0x58] sm:$0xff] %v3090
    %3107 = vst [vmem:[#allocation10 + $0x60] sm:$0xff] %v3091
    %3108 = vst [vmem:[#allocation10 + $0x68] sm:$0xff] %v3092
    %3109 = vst [vmem:[#allocation10 + $0x70] sm:$0xff] %v3093
    %3110 = vst [vmem:[#allocation10 + $0x78] sm:$0xff] %v3094
    // Predicated region
    $region38: #{tpu_custom_call.1} parent=1 // pred_check
      _
    $region39: #{tpu_custom_call.1} parent=1 // pred_check_branch
      %3112 = sbr.rel (0) target = $region41
    $region40: #{tpu_custom_call.1} parent=1 // pred_region
      %3114 = vsyncadd [#allocation4], 0
      %s3115 = sshll.u32 [#allocation10], 4
      %s3116 = int_to_ptr.vmem [resolvable:$true] %s3115
      %s3117 = sshll.u32 %s5, 4
      %s3118 = int_to_ptr.hbm [resolvable:$true] %s3117
      %3123 = dma.vmem_to_hbm [thread:$0]  %s3116, 2048, %s3118, [#allocation4], 128, 128, 8
    $region41: #{tpu_custom_call.1} parent=1 // pred_fallthru
      _
    // Predicated region
    $region42: #{tpu_custom_call.1} parent=1 // pred_check
      _
    $region43: #{tpu_custom_call.1} parent=1 // pred_check_branch
      %3125 = sbr.rel (0) target = $region45
    $region44: #{tpu_custom_call.1} parent=1 // pred_region
      %3127 = dma.done [#allocation4], 2048
    $region45: #{tpu_custom_call.1} parent=1 // pred_fallthru
      _
    %3128 = vsyncpa [#allocation3], 1
    %3129 = vsyncpa [#allocation6], 1
    %3130 = vsyncpa [#allocation9], 1
    %3131 = vsyncpa [#allocation4], 1

</llo_original>
